<compile_context>
chip_gen: v7x
topology: tpu7x:2x2x1
jax: 0.10.0
libtpu: 0.0.40
codegen_flags: <defaults>
</compile_context>

<pallas_src>
import math

import jax
import jax.numpy as jnp
from jax.experimental import pallas as pl
from jax.experimental.pallas import tpu as pltpu

# ---- tiny BERT config -------------------------------------------------------
VOCAB = 100
HIDDEN = 32
N_HEADS = 4
HEAD_DIM = HIDDEN // N_HEADS
INTER = 64
N_LAYERS = 2
MAX_POS = 16
LN_EPS = 1e-12

# MXU operand dtype (bf16-native on v5e/v6e/v7x).  ~1e-3 deviation vs f32
# PyTorch; set to jnp.float32 for closer numerical parity.
MXU_DTYPE = jnp.bfloat16


# ---- kernel helpers ---------------------------------------------------------
def _layernorm(x, g, b):
    mu = jnp.mean(x, axis=-1, keepdims=True)
    var = jnp.mean(jnp.square(x - mu), axis=-1, keepdims=True)
    return (x - mu) * jax.lax.rsqrt(var + LN_EPS) * g + b


# ---- fused kernel: embeddings-LN + all encoder layers + pooler --------------
def bert_fused_kernel(emb_ref, mask_ref, g0_ref, b0_ref,
                      wqkv_ref, bqkv_ref, wo_ref, bo_ref,
                      ln1g_ref, ln1b_ref,
                      w1_ref, b1_ref, w2_ref, b2_ref,
                      ln2g_ref, ln2b_ref,
                      poolw_ref, poolb_ref,
                      seq_ref, pooled_ref):
    mxu_dtype = wqkv_ref.dtype
    bsz = pooled_ref.shape[0]
    seq_len = seq_ref.shape[0] // bsz

    x = _layernorm(emb_ref[...], g0_ref[...], b0_ref[...])   # (B*S, H) f32
    mask = mask_ref[...]                                       # (B*S, B*S) additive

    for layer in range(N_LAYERS):  # static unroll; all weights resident in VMEM
        # --- fused QKV projection: one (B*S, H) x (H, 3H) matmul ------------
        # (scale 1/sqrt(HEAD_DIM) is pre-folded into the Q columns + bias)
        qkv = jnp.dot(x.astype(mxu_dtype), wqkv_ref[layer],
                      preferred_element_type=jnp.float32) + bqkv_ref[layer]   # (B*S, 3H)

        # --- self attention, per head on flat (B*S) rows ---------------------
        # cross-batch and padded keys are masked out by `mask` (-1e9),
        # so flattening batch into the row axis is exact.
        ctx_heads = []
        for n in range(N_HEADS):
            lo = n * HEAD_DIM
            q_n = qkv[:, lo:lo + HEAD_DIM].astype(mxu_dtype)                  # (B*S, D)
            k_n = qkv[:, HIDDEN + lo:HIDDEN + lo + HEAD_DIM].astype(mxu_dtype)
            v_n = qkv[:, 2 * HIDDEN + lo:2 * HIDDEN + lo + HEAD_DIM].astype(mxu_dtype)

            s = jnp.einsum('qd,kd->qk', q_n, k_n,
                           preferred_element_type=jnp.float32) + mask         # (B*S, B*S)
            s = s - jnp.max(s, axis=-1, keepdims=True)
            p = jnp.exp(s)
            p = p * pl.reciprocal(jnp.sum(p, axis=-1, keepdims=True), approx=True)

            ctx_heads.append(jnp.dot(p.astype(mxu_dtype), v_n,
                                     preferred_element_type=jnp.float32))     # (B*S, D)

        ctx = jnp.concatenate(ctx_heads, axis=-1)                             # (B*S, H)
        attn = jnp.dot(ctx.astype(mxu_dtype), wo_ref[layer],
                       preferred_element_type=jnp.float32) + bo_ref[layer]    # (B*S, H)

        h1 = _layernorm(x + attn, ln1g_ref[layer], ln1b_ref[layer])

        # --- feed-forward -----------------------------------------------------
        ff = jnp.dot(h1.astype(mxu_dtype), w1_ref[layer],
                     preferred_element_type=jnp.float32) + b1_ref[layer]
        # TODO(synk): PyTorch nn.GELU default is exact erf; tanh approximation used here.
        ff = jax.nn.gelu(ff, approximate=True)
        ff = jnp.dot(ff.astype(mxu_dtype), w2_ref[layer],
                     preferred_element_type=jnp.float32) + b2_ref[layer]
        x = _layernorm(h1 + ff, ln2g_ref[layer], ln2b_ref[layer])

    seq_ref[...] = x
    # pooler on the [CLS] row of each batch element (rows b*seq_len)
    cls = jnp.concatenate([x[b * seq_len:b * seq_len + 1, :] for b in range(bsz)],
                          axis=0)                                             # (B, H)
    pooled_ref[...] = jnp.tanh(
        jnp.dot(cls.astype(mxu_dtype), poolw_ref[...],
                preferred_element_type=jnp.float32) + poolb_ref[...])


# ---- pallas_call wrapper ----------------------------------------------------
def bert_forward(params, input_ids, attention_mask=None):
    B, S = input_ids.shape
    # Embedding gathers (JAX glue): word + position + token_type(=0).
    # TODO(synk): token_type_ids assumed all-zero (segment 0).
    emb = (params["word_emb"][input_ids]
           + params["pos_emb"][jnp.arange(S)][None, :, :]
           + params["tok_emb"][0][None, None, :]).astype(jnp.float32)
    emb_flat = emb.reshape(B * S, HIDDEN)

    if attention_mask is None:
        attention_mask = jnp.ones((B, S), jnp.float32)
    # Combined additive mask on flattened (B*S) rows/cols:
    #   0 where (same batch element AND key not padded), -1e9 otherwise.
    key_keep = attention_mask.astype(jnp.float32).reshape(B * S) > 0.5
    batch_id = jnp.repeat(jnp.arange(B), S)
    same_batch = batch_id[:, None] == batch_id[None, :]
    mask2d = jnp.where(same_batch & key_keep[None, :], 0.0, -1e9).astype(jnp.float32)

    vmem = pl.BlockSpec(memory_space=pltpu.MemorySpace.VMEM)
    seq_flat, pooled = pl.pallas_call(
        bert_fused_kernel,
        out_shape=(jax.ShapeDtypeStruct((B * S, HIDDEN), jnp.float32),
                   jax.ShapeDtypeStruct((B, HIDDEN), jnp.float32)),
        in_specs=[vmem] * 18,
        out_specs=(vmem, vmem),
    )(emb_flat, mask2d,
      params["emb_ln_g"], params["emb_ln_b"],
      params["wqkv"], params["bqkv"], params["wo"], params["bo"],
      params["ln1_g"], params["ln1_b"],
      params["w1"], params["b1"], params["w2"], params["b2"],
      params["ln2_g"], params["ln2_b"],
      params["pool_w"], params["pool_b"])
    return seq_flat.reshape(B, S, HIDDEN), pooled


# ---- parameters -------------------------------------------------------------
def init_params(key):
    keys = iter(jax.random.split(key, 32))

    def normal(shape):
        return 0.02 * jax.random.normal(next(keys), shape, jnp.float32)

    scale = 1.0 / math.sqrt(HEAD_DIM)

    params = {
        "word_emb": normal((VOCAB, HIDDEN)),
        "pos_emb": normal((MAX_POS, HIDDEN)),
        "tok_emb": normal((2, HIDDEN)),
        "emb_ln_g": jnp.ones((1, HIDDEN), jnp.float32),
        "emb_ln_b": jnp.zeros((1, HIDDEN), jnp.float32),
        "pool_w": normal((HIDDEN, HIDDEN)).astype(MXU_DTYPE),
        "pool_b": jnp.zeros((1, HIDDEN), jnp.float32),
    }

    per_layer = {k: [] for k in (
        "wqkv", "bqkv", "wo", "bo", "ln1_g", "ln1_b",
        "w1", "b1", "w2", "b2", "ln2_g", "ln2_b")}
    for _ in range(N_LAYERS):
        wq, wk, wv = (normal((HIDDEN, HIDDEN)) for _ in range(3))
        bq = jnp.zeros((1, HIDDEN), jnp.float32)
        bk = jnp.zeros((1, HIDDEN), jnp.float32)
        bv = jnp.zeros((1, HIDDEN), jnp.float32)
        # Fused QKV weight (H, 3H); 1/sqrt(HEAD_DIM) folded into the Q part
        # (mathematically equivalent to scaling the attention scores).
        per_layer["wqkv"].append(
            jnp.concatenate([wq * scale, wk, wv], axis=1).astype(MXU_DTYPE))
        per_layer["bqkv"].append(jnp.concatenate([bq * scale, bk, bv], axis=1))
        per_layer["wo"].append(normal((HIDDEN, HIDDEN)).astype(MXU_DTYPE))
        per_layer["bo"].append(jnp.zeros((1, HIDDEN), jnp.float32))
        per_layer["ln1_g"].append(jnp.ones((1, HIDDEN), jnp.float32))
        per_layer["ln1_b"].append(jnp.zeros((1, HIDDEN), jnp.float32))
        per_layer["w1"].append(normal((HIDDEN, INTER)).astype(MXU_DTYPE))
        per_layer["b1"].append(jnp.zeros((1, INTER), jnp.float32))
        per_layer["w2"].append(normal((INTER, HIDDEN)).astype(MXU_DTYPE))
        per_layer["b2"].append(jnp.zeros((1, HIDDEN), jnp.float32))
        per_layer["ln2_g"].append(jnp.ones((1, HIDDEN), jnp.float32))
        per_layer["ln2_b"].append(jnp.zeros((1, HIDDEN), jnp.float32))

    params.update({k: jnp.stack(v, axis=0) for k, v in per_layer.items()})
    return params


# ---- main -------------------------------------------------------------------
if __name__ == "__main__":
    key = jax.random.PRNGKey(0)
    k_param, k_ids = jax.random.split(key)

    B, S = 2, 8
    params = init_params(k_param)
    input_ids = jax.random.randint(k_ids, (B, S), 0, VOCAB, dtype=jnp.int32)
    attention_mask = jnp.ones((B, S), jnp.float32).at[1, 6:].set(0.0)  # pad last 2 of row 1

    fwd = jax.jit(bert_forward)
    seq_out, pooled = fwd(params, input_ids, attention_mask)
    jax.block_until_ready((seq_out, pooled))
    assert seq_out.shape == (B, S, HIDDEN) and pooled.shape == (B, HIDDEN)
    print("KERNEL_OK")
</pallas_src>

<mosaic_0001>
module attributes {stable_mosaic.version = 11 : i64} {
  func.func @bert_fused_kernel(%arg0: memref<16x32xf32, #tpu.memory_space<vmem>>, %arg1: memref<16x16xf32, #tpu.memory_space<vmem>>, %arg2: memref<1x32xf32, #tpu.memory_space<vmem>>, %arg3: memref<1x32xf32, #tpu.memory_space<vmem>>, %arg4: memref<2x32x96xbf16, #tpu.memory_space<vmem>>, %arg5: memref<2x1x96xf32, #tpu.memory_space<vmem>>, %arg6: memref<2x32x32xbf16, #tpu.memory_space<vmem>>, %arg7: memref<2x1x32xf32, #tpu.memory_space<vmem>>, %arg8: memref<2x1x32xf32, #tpu.memory_space<vmem>>, %arg9: memref<2x1x32xf32, #tpu.memory_space<vmem>>, %arg10: memref<2x32x64xbf16, #tpu.memory_space<vmem>>, %arg11: memref<2x1x64xf32, #tpu.memory_space<vmem>>, %arg12: memref<2x64x32xbf16, #tpu.memory_space<vmem>>, %arg13: memref<2x1x32xf32, #tpu.memory_space<vmem>>, %arg14: memref<2x1x32xf32, #tpu.memory_space<vmem>>, %arg15: memref<2x1x32xf32, #tpu.memory_space<vmem>>, %arg16: memref<32x32xbf16, #tpu.memory_space<vmem>>, %arg17: memref<1x32xf32, #tpu.memory_space<vmem>>, %arg18: memref<16x32xf32, #tpu.memory_space<vmem>>, %arg19: memref<2x32xf32, #tpu.memory_space<vmem>>) attributes {dimension_semantics = [], scalar_prefetch = 0 : i64, scratch_operands = 0 : i64, tpu.core_type = #tpu.core_type<tc>} {
    %c0 = arith.constant 0 : index
    %c0_0 = arith.constant 0 : index
    %0 = vector.load %arg0[%c0, %c0_0] : memref<16x32xf32, #tpu.memory_space<vmem>>, vector<16x32xf32>
    %c0_1 = arith.constant 0 : index
    %c0_2 = arith.constant 0 : index
    %1 = vector.load %arg2[%c0_1, %c0_2] : memref<1x32xf32, #tpu.memory_space<vmem>>, vector<1x32xf32>
    %c0_3 = arith.constant 0 : index
    %c0_4 = arith.constant 0 : index
    %2 = vector.load %arg3[%c0_3, %c0_4] : memref<1x32xf32, #tpu.memory_space<vmem>>, vector<1x32xf32>
    %cst = arith.constant dense<0.000000e+00> : vector<16xf32>
    %3 = vector.multi_reduction <add>, %0, %cst [1] : vector<16x32xf32> to vector<16xf32>
    %4 = vector.shape_cast %3 : vector<16xf32> to vector<16x1xf32>
    %cst_5 = arith.constant 3.200000e+01 : f32
    %5 = vector.broadcast %cst_5 : f32 to vector<16x1xf32>
    %6 = arith.divf %4, %5 : vector<16x1xf32>
    %7 = vector.broadcast %6 : vector<16x1xf32> to vector<16x32xf32>
    %8 = arith.subf %0, %7 : vector<16x32xf32>
    %9 = arith.mulf %8, %8 : vector<16x32xf32>
    %cst_6 = arith.constant dense<0.000000e+00> : vector<16xf32>
    %10 = vector.multi_reduction <add>, %9, %cst_6 [1] : vector<16x32xf32> to vector<16xf32>
    %11 = vector.shape_cast %10 : vector<16xf32> to vector<16x1xf32>
    %cst_7 = arith.constant 3.200000e+01 : f32
    %12 = vector.broadcast %cst_7 : f32 to vector<16x1xf32>
    %13 = arith.divf %11, %12 : vector<16x1xf32>
    %14 = vector.broadcast %6 : vector<16x1xf32> to vector<16x32xf32>
    %15 = arith.subf %0, %14 : vector<16x32xf32>
    %cst_8 = arith.constant 9.99999996E-13 : f32
    %16 = vector.broadcast %cst_8 : f32 to vector<16x1xf32>
    %17 = arith.addf %13, %16 : vector<16x1xf32>
    %18 = math.rsqrt %17 : vector<16x1xf32>
    %19 = vector.broadcast %18 : vector<16x1xf32> to vector<16x32xf32>
    %20 = arith.mulf %15, %19 : vector<16x32xf32>
    %21 = vector.broadcast %1 : vector<1x32xf32> to vector<16x32xf32>
    %22 = arith.mulf %20, %21 : vector<16x32xf32>
    %23 = vector.broadcast %2 : vector<1x32xf32> to vector<16x32xf32>
    %24 = arith.addf %22, %23 : vector<16x32xf32>
    %c0_9 = arith.constant 0 : index
    %c0_10 = arith.constant 0 : index
    %25 = vector.load %arg1[%c0_9, %c0_10] : memref<16x16xf32, #tpu.memory_space<vmem>>, vector<16x16xf32>
    %26 = arith.truncf %24 : vector<16x32xf32> to vector<16x32xbf16>
    %c0_11 = arith.constant 0 : index
    %c0_12 = arith.constant 0 : index
    %c0_13 = arith.constant 0 : index
    %27 = vector.load %arg4[%c0_11, %c0_12, %c0_13] : memref<2x32x96xbf16, #tpu.memory_space<vmem>>, vector<1x32x96xbf16>
    %28 = vector.shape_cast %27 : vector<1x32x96xbf16> to vector<32x96xbf16>
    %cst_14 = arith.constant dense<0.000000e+00> : vector<16x96xf32>
    %29 = tpu.matmul %26, %28, %cst_14 {dimension_numbers = #tpu.dot_dimension_numbers<[1], [0], [0], [1], [0, 0, 1, 1], [], []>} : vector<16x32xbf16>, vector<32x96xbf16>, vector<16x96xf32> -> vector<16x96xf32>
    %c0_15 = arith.constant 0 : index
    %c0_16 = arith.constant 0 : index
    %c0_17 = arith.constant 0 : index
    %30 = vector.load %arg5[%c0_15, %c0_16, %c0_17] : memref<2x1x96xf32, #tpu.memory_space<vmem>>, vector<1x1x96xf32>
    %31 = vector.shape_cast %30 : vector<1x1x96xf32> to vector<1x96xf32>
    %32 = vector.broadcast %31 : vector<1x96xf32> to vector<16x96xf32>
    %33 = arith.addf %29, %32 : vector<16x96xf32>
    %34 = vector.extract_strided_slice %33 {offsets = [0, 0], sizes = [16, 8], strides = [1, 1]} : vector<16x96xf32> to vector<16x8xf32>
    %35 = arith.truncf %34 : vector<16x8xf32> to vector<16x8xbf16>
    %36 = vector.extract_strided_slice %33 {offsets = [0, 32], sizes = [16, 8], strides = [1, 1]} : vector<16x96xf32> to vector<16x8xf32>
    %37 = arith.truncf %36 : vector<16x8xf32> to vector<16x8xbf16>
    %38 = vector.extract_strided_slice %33 {offsets = [0, 64], sizes = [16, 8], strides = [1, 1]} : vector<16x96xf32> to vector<16x8xf32>
    %39 = arith.truncf %38 : vector<16x8xf32> to vector<16x8xbf16>
    "tpu.trace_start"() <{level = 10 : i32, message = "qd,kd->qk"}> : () -> ()
    %cst_18 = arith.constant dense<0.000000e+00> : vector<16x16xf32>
    %40 = tpu.matmul %35, %37, %cst_18 {dimension_numbers = #tpu.dot_dimension_numbers<[1], [1], [0], [0], [0, 0, 1, 0], [], []>} : vector<16x8xbf16>, vector<16x8xbf16>, vector<16x16xf32> -> vector<16x16xf32>
    "tpu.trace_stop"() : () -> ()
    %41 = arith.addf %40, %25 : vector<16x16xf32>
    %cst_19 = arith.constant dense<0xFF800000> : vector<16xf32>
    %42 = vector.multi_reduction <maximumf>, %41, %cst_19 [1] : vector<16x16xf32> to vector<16xf32>
    %43 = vector.shape_cast %42 : vector<16xf32> to vector<16x1xf32>
    %44 = vector.broadcast %43 : vector<16x1xf32> to vector<16x16xf32>
    %45 = arith.subf %41, %44 : vector<16x16xf32>
    %46 = math.exp %45 : vector<16x16xf32>
    %cst_20 = arith.constant dense<0.000000e+00> : vector<16xf32>
    %47 = vector.multi_reduction <add>, %46, %cst_20 [1] : vector<16x16xf32> to vector<16xf32>
    %48 = vector.shape_cast %47 : vector<16xf32> to vector<16x1xf32>
    %49 = tpu.reciprocal %48 {approx = true} : vector<16x1xf32> -> vector<16x1xf32>
    %50 = vector.broadcast %49 : vector<16x1xf32> to vector<16x16xf32>
    %51 = arith.mulf %46, %50 : vector<16x16xf32>
    %52 = arith.truncf %51 : vector<16x16xf32> to vector<16x16xbf16>
    %cst_21 = arith.constant dense<0.000000e+00> : vector<16x8xf32>
    %53 = tpu.matmul %52, %39, %cst_21 {dimension_numbers = #tpu.dot_dimension_numbers<[1], [0], [0], [1], [0, 0, 1, 1], [], []>} : vector<16x16xbf16>, vector<16x8xbf16>, vector<16x8xf32> -> vector<16x8xf32>
    %54 = vector.extract_strided_slice %33 {offsets = [0, 8], sizes = [16, 8], strides = [1, 1]} : vector<16x96xf32> to vector<16x8xf32>
    %55 = arith.truncf %54 : vector<16x8xf32> to vector<16x8xbf16>
    %56 = vector.extract_strided_slice %33 {offsets = [0, 40], sizes = [16, 8], strides = [1, 1]} : vector<16x96xf32> to vector<16x8xf32>
    %57 = arith.truncf %56 : vector<16x8xf32> to vector<16x8xbf16>
    %58 = vector.extract_strided_slice %33 {offsets = [0, 72], sizes = [16, 8], strides = [1, 1]} : vector<16x96xf32> to vector<16x8xf32>
    %59 = arith.truncf %58 : vector<16x8xf32> to vector<16x8xbf16>
    "tpu.trace_start"() <{level = 10 : i32, message = "qd,kd->qk"}> : () -> ()
    %cst_22 = arith.constant dense<0.000000e+00> : vector<16x16xf32>
    %60 = tpu.matmul %55, %57, %cst_22 {dimension_numbers = #tpu.dot_dimension_numbers<[1], [1], [0], [0], [0, 0, 1, 0], [], []>} : vector<16x8xbf16>, vector<16x8xbf16>, vector<16x16xf32> -> vector<16x16xf32>
    "tpu.trace_stop"() : () -> ()
    %61 = arith.addf %60, %25 : vector<16x16xf32>
    %cst_23 = arith.constant dense<0xFF800000> : vector<16xf32>
    %62 = vector.multi_reduction <maximumf>, %61, %cst_23 [1] : vector<16x16xf32> to vector<16xf32>
    %63 = vector.shape_cast %62 : vector<16xf32> to vector<16x1xf32>
    %64 = vector.broadcast %63 : vector<16x1xf32> to vector<16x16xf32>
    %65 = arith.subf %61, %64 : vector<16x16xf32>
    %66 = math.exp %65 : vector<16x16xf32>
    %cst_24 = arith.constant dense<0.000000e+00> : vector<16xf32>
    %67 = vector.multi_reduction <add>, %66, %cst_24 [1] : vector<16x16xf32> to vector<16xf32>
    %68 = vector.shape_cast %67 : vector<16xf32> to vector<16x1xf32>
    %69 = tpu.reciprocal %68 {approx = true} : vector<16x1xf32> -> vector<16x1xf32>
    %70 = vector.broadcast %69 : vector<16x1xf32> to vector<16x16xf32>
    %71 = arith.mulf %66, %70 : vector<16x16xf32>
    %72 = arith.truncf %71 : vector<16x16xf32> to vector<16x16xbf16>
    %cst_25 = arith.constant dense<0.000000e+00> : vector<16x8xf32>
    %73 = tpu.matmul %72, %59, %cst_25 {dimension_numbers = #tpu.dot_dimension_numbers<[1], [0], [0], [1], [0, 0, 1, 1], [], []>} : vector<16x16xbf16>, vector<16x8xbf16>, vector<16x8xf32> -> vector<16x8xf32>
    %74 = vector.extract_strided_slice %33 {offsets = [0, 16], sizes = [16, 8], strides = [1, 1]} : vector<16x96xf32> to vector<16x8xf32>
    %75 = arith.truncf %74 : vector<16x8xf32> to vector<16x8xbf16>
    %76 = vector.extract_strided_slice %33 {offsets = [0, 48], sizes = [16, 8], strides = [1, 1]} : vector<16x96xf32> to vector<16x8xf32>
    %77 = arith.truncf %76 : vector<16x8xf32> to vector<16x8xbf16>
    %78 = vector.extract_strided_slice %33 {offsets = [0, 80], sizes = [16, 8], strides = [1, 1]} : vector<16x96xf32> to vector<16x8xf32>
    %79 = arith.truncf %78 : vector<16x8xf32> to vector<16x8xbf16>
    "tpu.trace_start"() <{level = 10 : i32, message = "qd,kd->qk"}> : () -> ()
    %cst_26 = arith.constant dense<0.000000e+00> : vector<16x16xf32>
    %80 = tpu.matmul %75, %77, %cst_26 {dimension_numbers = #tpu.dot_dimension_numbers<[1], [1], [0], [0], [0, 0, 1, 0], [], []>} : vector<16x8xbf16>, vector<16x8xbf16>, vector<16x16xf32> -> vector<16x16xf32>
    "tpu.trace_stop"() : () -> ()
    %81 = arith.addf %80, %25 : vector<16x16xf32>
    %cst_27 = arith.constant dense<0xFF800000> : vector<16xf32>
    %82 = vector.multi_reduction <maximumf>, %81, %cst_27 [1] : vector<16x16xf32> to vector<16xf32>
    %83 = vector.shape_cast %82 : vector<16xf32> to vector<16x1xf32>
    %84 = vector.broadcast %83 : vector<16x1xf32> to vector<16x16xf32>
    %85 = arith.subf %81, %84 : vector<16x16xf32>
    %86 = math.exp %85 : vector<16x16xf32>
    %cst_28 = arith.constant dense<0.000000e+00> : vector<16xf32>
    %87 = vector.multi_reduction <add>, %86, %cst_28 [1] : vector<16x16xf32> to vector<16xf32>
    %88 = vector.shape_cast %87 : vector<16xf32> to vector<16x1xf32>
    %89 = tpu.reciprocal %88 {approx = true} : vector<16x1xf32> -> vector<16x1xf32>
    %90 = vector.broadcast %89 : vector<16x1xf32> to vector<16x16xf32>
    %91 = arith.mulf %86, %90 : vector<16x16xf32>
    %92 = arith.truncf %91 : vector<16x16xf32> to vector<16x16xbf16>
    %cst_29 = arith.constant dense<0.000000e+00> : vector<16x8xf32>
    %93 = tpu.matmul %92, %79, %cst_29 {dimension_numbers = #tpu.dot_dimension_numbers<[1], [0], [0], [1], [0, 0, 1, 1], [], []>} : vector<16x16xbf16>, vector<16x8xbf16>, vector<16x8xf32> -> vector<16x8xf32>
    %94 = vector.extract_strided_slice %33 {offsets = [0, 24], sizes = [16, 8], strides = [1, 1]} : vector<16x96xf32> to vector<16x8xf32>
    %95 = arith.truncf %94 : vector<16x8xf32> to vector<16x8xbf16>
    %96 = vector.extract_strided_slice %33 {offsets = [0, 56], sizes = [16, 8], strides = [1, 1]} : vector<16x96xf32> to vector<16x8xf32>
    %97 = arith.truncf %96 : vector<16x8xf32> to vector<16x8xbf16>
    %98 = vector.extract_strided_slice %33 {offsets = [0, 88], sizes = [16, 8], strides = [1, 1]} : vector<16x96xf32> to vector<16x8xf32>
    %99 = arith.truncf %98 : vector<16x8xf32> to vector<16x8xbf16>
    "tpu.trace_start"() <{level = 10 : i32, message = "qd,kd->qk"}> : () -> ()
    %cst_30 = arith.constant dense<0.000000e+00> : vector<16x16xf32>
    %100 = tpu.matmul %95, %97, %cst_30 {dimension_numbers = #tpu.dot_dimension_numbers<[1], [1], [0], [0], [0, 0, 1, 0], [], []>} : vector<16x8xbf16>, vector<16x8xbf16>, vector<16x16xf32> -> vector<16x16xf32>
    "tpu.trace_stop"() : () -> ()
    %101 = arith.addf %100, %25 : vector<16x16xf32>
    %cst_31 = arith.constant dense<0xFF800000> : vector<16xf32>
    %102 = vector.multi_reduction <maximumf>, %101, %cst_31 [1] : vector<16x16xf32> to vector<16xf32>
    %103 = vector.shape_cast %102 : vector<16xf32> to vector<16x1xf32>
    %104 = vector.broadcast %103 : vector<16x1xf32> to vector<16x16xf32>
    %105 = arith.subf %101, %104 : vector<16x16xf32>
    %106 = math.exp %105 : vector<16x16xf32>
    %cst_32 = arith.constant dense<0.000000e+00> : vector<16xf32>
    %107 = vector.multi_reduction <add>, %106, %cst_32 [1] : vector<16x16xf32> to vector<16xf32>
    %108 = vector.shape_cast %107 : vector<16xf32> to vector<16x1xf32>
    %109 = tpu.reciprocal %108 {approx = true} : vector<16x1xf32> -> vector<16x1xf32>
    %110 = vector.broadcast %109 : vector<16x1xf32> to vector<16x16xf32>
    %111 = arith.mulf %106, %110 : vector<16x16xf32>
    %112 = arith.truncf %111 : vector<16x16xf32> to vector<16x16xbf16>
    %cst_33 = arith.constant dense<0.000000e+00> : vector<16x8xf32>
    %113 = tpu.matmul %112, %99, %cst_33 {dimension_numbers = #tpu.dot_dimension_numbers<[1], [0], [0], [1], [0, 0, 1, 1], [], []>} : vector<16x16xbf16>, vector<16x8xbf16>, vector<16x8xf32> -> vector<16x8xf32>
    %114 = tpu.concatenate %53, %73, %93, %113 in 1 : vector<16x8xf32>, vector<16x8xf32>, vector<16x8xf32>, vector<16x8xf32> -> vector<16x32xf32>
    %115 = arith.truncf %114 : vector<16x32xf32> to vector<16x32xbf16>
    %c0_34 = arith.constant 0 : index
    %c0_35 = arith.constant 0 : index
    %c0_36 = arith.constant 0 : index
    %116 = vector.load %arg6[%c0_34, %c0_35, %c0_36] : memref<2x32x32xbf16, #tpu.memory_space<vmem>>, vector<1x32x32xbf16>
    %117 = vector.shape_cast %116 : vector<1x32x32xbf16> to vector<32x32xbf16>
    %cst_37 = arith.constant dense<0.000000e+00> : vector<16x32xf32>
    %118 = tpu.matmul %115, %117, %cst_37 {dimension_numbers = #tpu.dot_dimension_numbers<[1], [0], [0], [1], [0, 0, 1, 1], [], []>} : vector<16x32xbf16>, vector<32x32xbf16>, vector<16x32xf32> -> vector<16x32xf32>
    %c0_38 = arith.constant 0 : index
    %c0_39 = arith.constant 0 : index
    %c0_40 = arith.constant 0 : index
    %119 = vector.load %arg7[%c0_38, %c0_39, %c0_40] : memref<2x1x32xf32, #tpu.memory_space<vmem>>, vector<1x1x32xf32>
    %120 = vector.shape_cast %119 : vector<1x1x32xf32> to vector<1x32xf32>
    %121 = vector.broadcast %120 : vector<1x32xf32> to vector<16x32xf32>
    %122 = arith.addf %118, %121 : vector<16x32xf32>
    %123 = arith.addf %24, %122 : vector<16x32xf32>
    %c0_41 = arith.constant 0 : index
    %c0_42 = arith.constant 0 : index
    %c0_43 = arith.constant 0 : index
    %124 = vector.load %arg8[%c0_41, %c0_42, %c0_43] : memref<2x1x32xf32, #tpu.memory_space<vmem>>, vector<1x1x32xf32>
    %125 = vector.shape_cast %124 : vector<1x1x32xf32> to vector<1x32xf32>
    %c0_44 = arith.constant 0 : index
    %c0_45 = arith.constant 0 : index
    %c0_46 = arith.constant 0 : index
    %126 = vector.load %arg9[%c0_44, %c0_45, %c0_46] : memref<2x1x32xf32, #tpu.memory_space<vmem>>, vector<1x1x32xf32>
    %127 = vector.shape_cast %126 : vector<1x1x32xf32> to vector<1x32xf32>
    %cst_47 = arith.constant dense<0.000000e+00> : vector<16xf32>
    %128 = vector.multi_reduction <add>, %123, %cst_47 [1] : vector<16x32xf32> to vector<16xf32>
    %129 = vector.shape_cast %128 : vector<16xf32> to vector<16x1xf32>
    %cst_48 = arith.constant 3.200000e+01 : f32
    %130 = vector.broadcast %cst_48 : f32 to vector<16x1xf32>
    %131 = arith.divf %129, %130 : vector<16x1xf32>
    %132 = vector.broadcast %131 : vector<16x1xf32> to vector<16x32xf32>
    %133 = arith.subf %123, %132 : vector<16x32xf32>
    %134 = arith.mulf %133, %133 : vector<16x32xf32>
    %cst_49 = arith.constant dense<0.000000e+00> : vector<16xf32>
    %135 = vector.multi_reduction <add>, %134, %cst_49 [1] : vector<16x32xf32> to vector<16xf32>
    %136 = vector.shape_cast %135 : vector<16xf32> to vector<16x1xf32>
    %cst_50 = arith.constant 3.200000e+01 : f32
    %137 = vector.broadcast %cst_50 : f32 to vector<16x1xf32>
    %138 = arith.divf %136, %137 : vector<16x1xf32>
    %139 = vector.broadcast %131 : vector<16x1xf32> to vector<16x32xf32>
    %140 = arith.subf %123, %139 : vector<16x32xf32>
    %cst_51 = arith.constant 9.99999996E-13 : f32
    %141 = vector.broadcast %cst_51 : f32 to vector<16x1xf32>
    %142 = arith.addf %138, %141 : vector<16x1xf32>
    %143 = math.rsqrt %142 : vector<16x1xf32>
    %144 = vector.broadcast %143 : vector<16x1xf32> to vector<16x32xf32>
    %145 = arith.mulf %140, %144 : vector<16x32xf32>
    %146 = vector.broadcast %125 : vector<1x32xf32> to vector<16x32xf32>
    %147 = arith.mulf %145, %146 : vector<16x32xf32>
    %148 = vector.broadcast %127 : vector<1x32xf32> to vector<16x32xf32>
    %149 = arith.addf %147, %148 : vector<16x32xf32>
    %150 = arith.truncf %149 : vector<16x32xf32> to vector<16x32xbf16>
    %c0_52 = arith.constant 0 : index
    %c0_53 = arith.constant 0 : index
    %c0_54 = arith.constant 0 : index
    %151 = vector.load %arg10[%c0_52, %c0_53, %c0_54] : memref<2x32x64xbf16, #tpu.memory_space<vmem>>, vector<1x32x64xbf16>
    %152 = vector.shape_cast %151 : vector<1x32x64xbf16> to vector<32x64xbf16>
    %cst_55 = arith.constant dense<0.000000e+00> : vector<16x64xf32>
    %153 = tpu.matmul %150, %152, %cst_55 {dimension_numbers = #tpu.dot_dimension_numbers<[1], [0], [0], [1], [0, 0, 1, 1], [], []>} : vector<16x32xbf16>, vector<32x64xbf16>, vector<16x64xf32> -> vector<16x64xf32>
    %c0_56 = arith.constant 0 : index
    %c0_57 = arith.constant 0 : index
    %c0_58 = arith.constant 0 : index
    %154 = vector.load %arg11[%c0_56, %c0_57, %c0_58] : memref<2x1x64xf32, #tpu.memory_space<vmem>>, vector<1x1x64xf32>
    %155 = vector.shape_cast %154 : vector<1x1x64xf32> to vector<1x64xf32>
    %156 = vector.broadcast %155 : vector<1x64xf32> to vector<16x64xf32>
    %157 = arith.addf %153, %156 : vector<16x64xf32>
    %158 = arith.mulf %157, %157 : vector<16x64xf32>
    %159 = arith.mulf %157, %158 : vector<16x64xf32>
    %cst_59 = arith.constant 4.471500e-02 : f32
    %160 = vector.broadcast %cst_59 : f32 to vector<16x64xf32>
    %161 = arith.mulf %160, %159 : vector<16x64xf32>
    %162 = arith.addf %157, %161 : vector<16x64xf32>
    %cst_60 = arith.constant 0.797884583 : f32
    %163 = vector.broadcast %cst_60 : f32 to vector<16x64xf32>
    %164 = arith.mulf %163, %162 : vector<16x64xf32>
    %165 = math.tanh %164 : vector<16x64xf32>
    %cst_61 = arith.constant 1.000000e+00 : f32
    %166 = vector.broadcast %cst_61 : f32 to vector<16x64xf32>
    %167 = arith.addf %166, %165 : vector<16x64xf32>
    %cst_62 = arith.constant 5.000000e-01 : f32
    %168 = vector.broadcast %cst_62 : f32 to vector<16x64xf32>
    %169 = arith.mulf %168, %167 : vector<16x64xf32>
    %170 = arith.mulf %157, %169 : vector<16x64xf32>
    %171 = arith.truncf %170 : vector<16x64xf32> to vector<16x64xbf16>
    %c0_63 = arith.constant 0 : index
    %c0_64 = arith.constant 0 : index
    %c0_65 = arith.constant 0 : index
    %172 = vector.load %arg12[%c0_63, %c0_64, %c0_65] : memref<2x64x32xbf16, #tpu.memory_space<vmem>>, vector<1x64x32xbf16>
    %173 = vector.shape_cast %172 : vector<1x64x32xbf16> to vector<64x32xbf16>
    %cst_66 = arith.constant dense<0.000000e+00> : vector<16x32xf32>
    %174 = tpu.matmul %171, %173, %cst_66 {dimension_numbers = #tpu.dot_dimension_numbers<[1], [0], [0], [1], [0, 0, 1, 1], [], []>} : vector<16x64xbf16>, vector<64x32xbf16>, vector<16x32xf32> -> vector<16x32xf32>
    %c0_67 = arith.constant 0 : index
    %c0_68 = arith.constant 0 : index
    %c0_69 = arith.constant 0 : index
    %175 = vector.load %arg13[%c0_67, %c0_68, %c0_69] : memref<2x1x32xf32, #tpu.memory_space<vmem>>, vector<1x1x32xf32>
    %176 = vector.shape_cast %175 : vector<1x1x32xf32> to vector<1x32xf32>
    %177 = vector.broadcast %176 : vector<1x32xf32> to vector<16x32xf32>
    %178 = arith.addf %174, %177 : vector<16x32xf32>
    %179 = arith.addf %149, %178 : vector<16x32xf32>
    %c0_70 = arith.constant 0 : index
    %c0_71 = arith.constant 0 : index
    %c0_72 = arith.constant 0 : index
    %180 = vector.load %arg14[%c0_70, %c0_71, %c0_72] : memref<2x1x32xf32, #tpu.memory_space<vmem>>, vector<1x1x32xf32>
    %181 = vector.shape_cast %180 : vector<1x1x32xf32> to vector<1x32xf32>
    %c0_73 = arith.constant 0 : index
    %c0_74 = arith.constant 0 : index
    %c0_75 = arith.constant 0 : index
    %182 = vector.load %arg15[%c0_73, %c0_74, %c0_75] : memref<2x1x32xf32, #tpu.memory_space<vmem>>, vector<1x1x32xf32>
    %183 = vector.shape_cast %182 : vector<1x1x32xf32> to vector<1x32xf32>
    %cst_76 = arith.constant dense<0.000000e+00> : vector<16xf32>
    %184 = vector.multi_reduction <add>, %179, %cst_76 [1] : vector<16x32xf32> to vector<16xf32>
    %185 = vector.shape_cast %184 : vector<16xf32> to vector<16x1xf32>
    %cst_77 = arith.constant 3.200000e+01 : f32
    %186 = vector.broadcast %cst_77 : f32 to vector<16x1xf32>
    %187 = arith.divf %185, %186 : vector<16x1xf32>
    %188 = vector.broadcast %187 : vector<16x1xf32> to vector<16x32xf32>
    %189 = arith.subf %179, %188 : vector<16x32xf32>
    %190 = arith.mulf %189, %189 : vector<16x32xf32>
    %cst_78 = arith.constant dense<0.000000e+00> : vector<16xf32>
    %191 = vector.multi_reduction <add>, %190, %cst_78 [1] : vector<16x32xf32> to vector<16xf32>
    %192 = vector.shape_cast %191 : vector<16xf32> to vector<16x1xf32>
    %cst_79 = arith.constant 3.200000e+01 : f32
    %193 = vector.broadcast %cst_79 : f32 to vector<16x1xf32>
    %194 = arith.divf %192, %193 : vector<16x1xf32>
    %195 = vector.broadcast %187 : vector<16x1xf32> to vector<16x32xf32>
    %196 = arith.subf %179, %195 : vector<16x32xf32>
    %cst_80 = arith.constant 9.99999996E-13 : f32
    %197 = vector.broadcast %cst_80 : f32 to vector<16x1xf32>
    %198 = arith.addf %194, %197 : vector<16x1xf32>
    %199 = math.rsqrt %198 : vector<16x1xf32>
    %200 = vector.broadcast %199 : vector<16x1xf32> to vector<16x32xf32>
    %201 = arith.mulf %196, %200 : vector<16x32xf32>
    %202 = vector.broadcast %181 : vector<1x32xf32> to vector<16x32xf32>
    %203 = arith.mulf %201, %202 : vector<16x32xf32>
    %204 = vector.broadcast %183 : vector<1x32xf32> to vector<16x32xf32>
    %205 = arith.addf %203, %204 : vector<16x32xf32>
    %206 = arith.truncf %205 : vector<16x32xf32> to vector<16x32xbf16>
    %c1 = arith.constant 1 : index
    %c0_81 = arith.constant 0 : index
    %c0_82 = arith.constant 0 : index
    %207 = vector.load %arg4[%c1, %c0_81, %c0_82] : memref<2x32x96xbf16, #tpu.memory_space<vmem>>, vector<1x32x96xbf16>
    %208 = vector.shape_cast %207 : vector<1x32x96xbf16> to vector<32x96xbf16>
    %cst_83 = arith.constant dense<0.000000e+00> : vector<16x96xf32>
    %209 = tpu.matmul %206, %208, %cst_83 {dimension_numbers = #tpu.dot_dimension_numbers<[1], [0], [0], [1], [0, 0, 1, 1], [], []>} : vector<16x32xbf16>, vector<32x96xbf16>, vector<16x96xf32> -> vector<16x96xf32>
    %c1_84 = arith.constant 1 : index
    %c0_85 = arith.constant 0 : index
    %c0_86 = arith.constant 0 : index
    %210 = vector.load %arg5[%c1_84, %c0_85, %c0_86] : memref<2x1x96xf32, #tpu.memory_space<vmem>>, vector<1x1x96xf32>
    %211 = vector.shape_cast %210 : vector<1x1x96xf32> to vector<1x96xf32>
    %212 = vector.broadcast %211 : vector<1x96xf32> to vector<16x96xf32>
    %213 = arith.addf %209, %212 : vector<16x96xf32>
    %214 = vector.extract_strided_slice %213 {offsets = [0, 0], sizes = [16, 8], strides = [1, 1]} : vector<16x96xf32> to vector<16x8xf32>
    %215 = arith.truncf %214 : vector<16x8xf32> to vector<16x8xbf16>
    %216 = vector.extract_strided_slice %213 {offsets = [0, 32], sizes = [16, 8], strides = [1, 1]} : vector<16x96xf32> to vector<16x8xf32>
    %217 = arith.truncf %216 : vector<16x8xf32> to vector<16x8xbf16>
    %218 = vector.extract_strided_slice %213 {offsets = [0, 64], sizes = [16, 8], strides = [1, 1]} : vector<16x96xf32> to vector<16x8xf32>
    %219 = arith.truncf %218 : vector<16x8xf32> to vector<16x8xbf16>
    "tpu.trace_start"() <{level = 10 : i32, message = "qd,kd->qk"}> : () -> ()
    %cst_87 = arith.constant dense<0.000000e+00> : vector<16x16xf32>
    %220 = tpu.matmul %215, %217, %cst_87 {dimension_numbers = #tpu.dot_dimension_numbers<[1], [1], [0], [0], [0, 0, 1, 0], [], []>} : vector<16x8xbf16>, vector<16x8xbf16>, vector<16x16xf32> -> vector<16x16xf32>
    "tpu.trace_stop"() : () -> ()
    %221 = arith.addf %220, %25 : vector<16x16xf32>
    %cst_88 = arith.constant dense<0xFF800000> : vector<16xf32>
    %222 = vector.multi_reduction <maximumf>, %221, %cst_88 [1] : vector<16x16xf32> to vector<16xf32>
    %223 = vector.shape_cast %222 : vector<16xf32> to vector<16x1xf32>
    %224 = vector.broadcast %223 : vector<16x1xf32> to vector<16x16xf32>
    %225 = arith.subf %221, %224 : vector<16x16xf32>
    %226 = math.exp %225 : vector<16x16xf32>
    %cst_89 = arith.constant dense<0.000000e+00> : vector<16xf32>
    %227 = vector.multi_reduction <add>, %226, %cst_89 [1] : vector<16x16xf32> to vector<16xf32>
    %228 = vector.shape_cast %227 : vector<16xf32> to vector<16x1xf32>
    %229 = tpu.reciprocal %228 {approx = true} : vector<16x1xf32> -> vector<16x1xf32>
    %230 = vector.broadcast %229 : vector<16x1xf32> to vector<16x16xf32>
    %231 = arith.mulf %226, %230 : vector<16x16xf32>
    %232 = arith.truncf %231 : vector<16x16xf32> to vector<16x16xbf16>
    %cst_90 = arith.constant dense<0.000000e+00> : vector<16x8xf32>
    %233 = tpu.matmul %232, %219, %cst_90 {dimension_numbers = #tpu.dot_dimension_numbers<[1], [0], [0], [1], [0, 0, 1, 1], [], []>} : vector<16x16xbf16>, vector<16x8xbf16>, vector<16x8xf32> -> vector<16x8xf32>
    %234 = vector.extract_strided_slice %213 {offsets = [0, 8], sizes = [16, 8], strides = [1, 1]} : vector<16x96xf32> to vector<16x8xf32>
    %235 = arith.truncf %234 : vector<16x8xf32> to vector<16x8xbf16>
    %236 = vector.extract_strided_slice %213 {offsets = [0, 40], sizes = [16, 8], strides = [1, 1]} : vector<16x96xf32> to vector<16x8xf32>
    %237 = arith.truncf %236 : vector<16x8xf32> to vector<16x8xbf16>
    %238 = vector.extract_strided_slice %213 {offsets = [0, 72], sizes = [16, 8], strides = [1, 1]} : vector<16x96xf32> to vector<16x8xf32>
    %239 = arith.truncf %238 : vector<16x8xf32> to vector<16x8xbf16>
    "tpu.trace_start"() <{level = 10 : i32, message = "qd,kd->qk"}> : () -> ()
    %cst_91 = arith.constant dense<0.000000e+00> : vector<16x16xf32>
    %240 = tpu.matmul %235, %237, %cst_91 {dimension_numbers = #tpu.dot_dimension_numbers<[1], [1], [0], [0], [0, 0, 1, 0], [], []>} : vector<16x8xbf16>, vector<16x8xbf16>, vector<16x16xf32> -> vector<16x16xf32>
    "tpu.trace_stop"() : () -> ()
    %241 = arith.addf %240, %25 : vector<16x16xf32>
    %cst_92 = arith.constant dense<0xFF800000> : vector<16xf32>
    %242 = vector.multi_reduction <maximumf>, %241, %cst_92 [1] : vector<16x16xf32> to vector<16xf32>
    %243 = vector.shape_cast %242 : vector<16xf32> to vector<16x1xf32>
    %244 = vector.broadcast %243 : vector<16x1xf32> to vector<16x16xf32>
    %245 = arith.subf %241, %244 : vector<16x16xf32>
    %246 = math.exp %245 : vector<16x16xf32>
    %cst_93 = arith.constant dense<0.000000e+00> : vector<16xf32>
    %247 = vector.multi_reduction <add>, %246, %cst_93 [1] : vector<16x16xf32> to vector<16xf32>
    %248 = vector.shape_cast %247 : vector<16xf32> to vector<16x1xf32>
    %249 = tpu.reciprocal %248 {approx = true} : vector<16x1xf32> -> vector<16x1xf32>
    %250 = vector.broadcast %249 : vector<16x1xf32> to vector<16x16xf32>
    %251 = arith.mulf %246, %250 : vector<16x16xf32>
    %252 = arith.truncf %251 : vector<16x16xf32> to vector<16x16xbf16>
    %cst_94 = arith.constant dense<0.000000e+00> : vector<16x8xf32>
    %253 = tpu.matmul %252, %239, %cst_94 {dimension_numbers = #tpu.dot_dimension_numbers<[1], [0], [0], [1], [0, 0, 1, 1], [], []>} : vector<16x16xbf16>, vector<16x8xbf16>, vector<16x8xf32> -> vector<16x8xf32>
    %254 = vector.extract_strided_slice %213 {offsets = [0, 16], sizes = [16, 8], strides = [1, 1]} : vector<16x96xf32> to vector<16x8xf32>
    %255 = arith.truncf %254 : vector<16x8xf32> to vector<16x8xbf16>
    %256 = vector.extract_strided_slice %213 {offsets = [0, 48], sizes = [16, 8], strides = [1, 1]} : vector<16x96xf32> to vector<16x8xf32>
    %257 = arith.truncf %256 : vector<16x8xf32> to vector<16x8xbf16>
    %258 = vector.extract_strided_slice %213 {offsets = [0, 80], sizes = [16, 8], strides = [1, 1]} : vector<16x96xf32> to vector<16x8xf32>
    %259 = arith.truncf %258 : vector<16x8xf32> to vector<16x8xbf16>
    "tpu.trace_start"() <{level = 10 : i32, message = "qd,kd->qk"}> : () -> ()
    %cst_95 = arith.constant dense<0.000000e+00> : vector<16x16xf32>
    %260 = tpu.matmul %255, %257, %cst_95 {dimension_numbers = #tpu.dot_dimension_numbers<[1], [1], [0], [0], [0, 0, 1, 0], [], []>} : vector<16x8xbf16>, vector<16x8xbf16>, vector<16x16xf32> -> vector<16x16xf32>
    "tpu.trace_stop"() : () -> ()
    %261 = arith.addf %260, %25 : vector<16x16xf32>
    %cst_96 = arith.constant dense<0xFF800000> : vector<16xf32>
    %262 = vector.multi_reduction <maximumf>, %261, %cst_96 [1] : vector<16x16xf32> to vector<16xf32>
    %263 = vector.shape_cast %262 : vector<16xf32> to vector<16x1xf32>
    %264 = vector.broadcast %263 : vector<16x1xf32> to vector<16x16xf32>
    %265 = arith.subf %261, %264 : vector<16x16xf32>
    %266 = math.exp %265 : vector<16x16xf32>
    %cst_97 = arith.constant dense<0.000000e+00> : vector<16xf32>
    %267 = vector.multi_reduction <add>, %266, %cst_97 [1] : vector<16x16xf32> to vector<16xf32>
    %268 = vector.shape_cast %267 : vector<16xf32> to vector<16x1xf32>
    %269 = tpu.reciprocal %268 {approx = true} : vector<16x1xf32> -> vector<16x1xf32>
    %270 = vector.broadcast %269 : vector<16x1xf32> to vector<16x16xf32>
    %271 = arith.mulf %266, %270 : vector<16x16xf32>
    %272 = arith.truncf %271 : vector<16x16xf32> to vector<16x16xbf16>
    %cst_98 = arith.constant dense<0.000000e+00> : vector<16x8xf32>
    %273 = tpu.matmul %272, %259, %cst_98 {dimension_numbers = #tpu.dot_dimension_numbers<[1], [0], [0], [1], [0, 0, 1, 1], [], []>} : vector<16x16xbf16>, vector<16x8xbf16>, vector<16x8xf32> -> vector<16x8xf32>
    %274 = vector.extract_strided_slice %213 {offsets = [0, 24], sizes = [16, 8], strides = [1, 1]} : vector<16x96xf32> to vector<16x8xf32>
    %275 = arith.truncf %274 : vector<16x8xf32> to vector<16x8xbf16>
    %276 = vector.extract_strided_slice %213 {offsets = [0, 56], sizes = [16, 8], strides = [1, 1]} : vector<16x96xf32> to vector<16x8xf32>
    %277 = arith.truncf %276 : vector<16x8xf32> to vector<16x8xbf16>
    %278 = vector.extract_strided_slice %213 {offsets = [0, 88], sizes = [16, 8], strides = [1, 1]} : vector<16x96xf32> to vector<16x8xf32>
    %279 = arith.truncf %278 : vector<16x8xf32> to vector<16x8xbf16>
    "tpu.trace_start"() <{level = 10 : i32, message = "qd,kd->qk"}> : () -> ()
    %cst_99 = arith.constant dense<0.000000e+00> : vector<16x16xf32>
    %280 = tpu.matmul %275, %277, %cst_99 {dimension_numbers = #tpu.dot_dimension_numbers<[1], [1], [0], [0], [0, 0, 1, 0], [], []>} : vector<16x8xbf16>, vector<16x8xbf16>, vector<16x16xf32> -> vector<16x16xf32>
    "tpu.trace_stop"() : () -> ()
    %281 = arith.addf %280, %25 : vector<16x16xf32>
    %cst_100 = arith.constant dense<0xFF800000> : vector<16xf32>
    %282 = vector.multi_reduction <maximumf>, %281, %cst_100 [1] : vector<16x16xf32> to vector<16xf32>
    %283 = vector.shape_cast %282 : vector<16xf32> to vector<16x1xf32>
    %284 = vector.broadcast %283 : vector<16x1xf32> to vector<16x16xf32>
    %285 = arith.subf %281, %284 : vector<16x16xf32>
    %286 = math.exp %285 : vector<16x16xf32>
    %cst_101 = arith.constant dense<0.000000e+00> : vector<16xf32>
    %287 = vector.multi_reduction <add>, %286, %cst_101 [1] : vector<16x16xf32> to vector<16xf32>
    %288 = vector.shape_cast %287 : vector<16xf32> to vector<16x1xf32>
    %289 = tpu.reciprocal %288 {approx = true} : vector<16x1xf32> -> vector<16x1xf32>
    %290 = vector.broadcast %289 : vector<16x1xf32> to vector<16x16xf32>
    %291 = arith.mulf %286, %290 : vector<16x16xf32>
    %292 = arith.truncf %291 : vector<16x16xf32> to vector<16x16xbf16>
    %cst_102 = arith.constant dense<0.000000e+00> : vector<16x8xf32>
    %293 = tpu.matmul %292, %279, %cst_102 {dimension_numbers = #tpu.dot_dimension_numbers<[1], [0], [0], [1], [0, 0, 1, 1], [], []>} : vector<16x16xbf16>, vector<16x8xbf16>, vector<16x8xf32> -> vector<16x8xf32>
    %294 = tpu.concatenate %233, %253, %273, %293 in 1 : vector<16x8xf32>, vector<16x8xf32>, vector<16x8xf32>, vector<16x8xf32> -> vector<16x32xf32>
    %295 = arith.truncf %294 : vector<16x32xf32> to vector<16x32xbf16>
    %c1_103 = arith.constant 1 : index
    %c0_104 = arith.constant 0 : index
    %c0_105 = arith.constant 0 : index
    %296 = vector.load %arg6[%c1_103, %c0_104, %c0_105] : memref<2x32x32xbf16, #tpu.memory_space<vmem>>, vector<1x32x32xbf16>
    %297 = vector.shape_cast %296 : vector<1x32x32xbf16> to vector<32x32xbf16>
    %cst_106 = arith.constant dense<0.000000e+00> : vector<16x32xf32>
    %298 = tpu.matmul %295, %297, %cst_106 {dimension_numbers = #tpu.dot_dimension_numbers<[1], [0], [0], [1], [0, 0, 1, 1], [], []>} : vector<16x32xbf16>, vector<32x32xbf16>, vector<16x32xf32> -> vector<16x32xf32>
    %c1_107 = arith.constant 1 : index
    %c0_108 = arith.constant 0 : index
    %c0_109 = arith.constant 0 : index
    %299 = vector.load %arg7[%c1_107, %c0_108, %c0_109] : memref<2x1x32xf32, #tpu.memory_space<vmem>>, vector<1x1x32xf32>
    %300 = vector.shape_cast %299 : vector<1x1x32xf32> to vector<1x32xf32>
    %301 = vector.broadcast %300 : vector<1x32xf32> to vector<16x32xf32>
    %302 = arith.addf %298, %301 : vector<16x32xf32>
    %303 = arith.addf %205, %302 : vector<16x32xf32>
    %c1_110 = arith.constant 1 : index
    %c0_111 = arith.constant 0 : index
    %c0_112 = arith.constant 0 : index
    %304 = vector.load %arg8[%c1_110, %c0_111, %c0_112] : memref<2x1x32xf32, #tpu.memory_space<vmem>>, vector<1x1x32xf32>
    %305 = vector.shape_cast %304 : vector<1x1x32xf32> to vector<1x32xf32>
    %c1_113 = arith.constant 1 : index
    %c0_114 = arith.constant 0 : index
    %c0_115 = arith.constant 0 : index
    %306 = vector.load %arg9[%c1_113, %c0_114, %c0_115] : memref<2x1x32xf32, #tpu.memory_space<vmem>>, vector<1x1x32xf32>
    %307 = vector.shape_cast %306 : vector<1x1x32xf32> to vector<1x32xf32>
    %cst_116 = arith.constant dense<0.000000e+00> : vector<16xf32>
    %308 = vector.multi_reduction <add>, %303, %cst_116 [1] : vector<16x32xf32> to vector<16xf32>
    %309 = vector.shape_cast %308 : vector<16xf32> to vector<16x1xf32>
    %cst_117 = arith.constant 3.200000e+01 : f32
    %310 = vector.broadcast %cst_117 : f32 to vector<16x1xf32>
    %311 = arith.divf %309, %310 : vector<16x1xf32>
    %312 = vector.broadcast %311 : vector<16x1xf32> to vector<16x32xf32>
    %313 = arith.subf %303, %312 : vector<16x32xf32>
    %314 = arith.mulf %313, %313 : vector<16x32xf32>
    %cst_118 = arith.constant dense<0.000000e+00> : vector<16xf32>
    %315 = vector.multi_reduction <add>, %314, %cst_118 [1] : vector<16x32xf32> to vector<16xf32>
    %316 = vector.shape_cast %315 : vector<16xf32> to vector<16x1xf32>
    %cst_119 = arith.constant 3.200000e+01 : f32
    %317 = vector.broadcast %cst_119 : f32 to vector<16x1xf32>
    %318 = arith.divf %316, %317 : vector<16x1xf32>
    %319 = vector.broadcast %311 : vector<16x1xf32> to vector<16x32xf32>
    %320 = arith.subf %303, %319 : vector<16x32xf32>
    %cst_120 = arith.constant 9.99999996E-13 : f32
    %321 = vector.broadcast %cst_120 : f32 to vector<16x1xf32>
    %322 = arith.addf %318, %321 : vector<16x1xf32>
    %323 = math.rsqrt %322 : vector<16x1xf32>
    %324 = vector.broadcast %323 : vector<16x1xf32> to vector<16x32xf32>
    %325 = arith.mulf %320, %324 : vector<16x32xf32>
    %326 = vector.broadcast %305 : vector<1x32xf32> to vector<16x32xf32>
    %327 = arith.mulf %325, %326 : vector<16x32xf32>
    %328 = vector.broadcast %307 : vector<1x32xf32> to vector<16x32xf32>
    %329 = arith.addf %327, %328 : vector<16x32xf32>
    %330 = arith.truncf %329 : vector<16x32xf32> to vector<16x32xbf16>
    %c1_121 = arith.constant 1 : index
    %c0_122 = arith.constant 0 : index
    %c0_123 = arith.constant 0 : index
    %331 = vector.load %arg10[%c1_121, %c0_122, %c0_123] : memref<2x32x64xbf16, #tpu.memory_space<vmem>>, vector<1x32x64xbf16>
    %332 = vector.shape_cast %331 : vector<1x32x64xbf16> to vector<32x64xbf16>
    %cst_124 = arith.constant dense<0.000000e+00> : vector<16x64xf32>
    %333 = tpu.matmul %330, %332, %cst_124 {dimension_numbers = #tpu.dot_dimension_numbers<[1], [0], [0], [1], [0, 0, 1, 1], [], []>} : vector<16x32xbf16>, vector<32x64xbf16>, vector<16x64xf32> -> vector<16x64xf32>
    %c1_125 = arith.constant 1 : index
    %c0_126 = arith.constant 0 : index
    %c0_127 = arith.constant 0 : index
    %334 = vector.load %arg11[%c1_125, %c0_126, %c0_127] : memref<2x1x64xf32, #tpu.memory_space<vmem>>, vector<1x1x64xf32>
    %335 = vector.shape_cast %334 : vector<1x1x64xf32> to vector<1x64xf32>
    %336 = vector.broadcast %335 : vector<1x64xf32> to vector<16x64xf32>
    %337 = arith.addf %333, %336 : vector<16x64xf32>
    %338 = arith.mulf %337, %337 : vector<16x64xf32>
    %339 = arith.mulf %337, %338 : vector<16x64xf32>
    %cst_128 = arith.constant 4.471500e-02 : f32
    %340 = vector.broadcast %cst_128 : f32 to vector<16x64xf32>
    %341 = arith.mulf %340, %339 : vector<16x64xf32>
    %342 = arith.addf %337, %341 : vector<16x64xf32>
    %cst_129 = arith.constant 0.797884583 : f32
    %343 = vector.broadcast %cst_129 : f32 to vector<16x64xf32>
    %344 = arith.mulf %343, %342 : vector<16x64xf32>
    %345 = math.tanh %344 : vector<16x64xf32>
    %cst_130 = arith.constant 1.000000e+00 : f32
    %346 = vector.broadcast %cst_130 : f32 to vector<16x64xf32>
    %347 = arith.addf %346, %345 : vector<16x64xf32>
    %cst_131 = arith.constant 5.000000e-01 : f32
    %348 = vector.broadcast %cst_131 : f32 to vector<16x64xf32>
    %349 = arith.mulf %348, %347 : vector<16x64xf32>
    %350 = arith.mulf %337, %349 : vector<16x64xf32>
    %351 = arith.truncf %350 : vector<16x64xf32> to vector<16x64xbf16>
    %c1_132 = arith.constant 1 : index
    %c0_133 = arith.constant 0 : index
    %c0_134 = arith.constant 0 : index
    %352 = vector.load %arg12[%c1_132, %c0_133, %c0_134] : memref<2x64x32xbf16, #tpu.memory_space<vmem>>, vector<1x64x32xbf16>
    %353 = vector.shape_cast %352 : vector<1x64x32xbf16> to vector<64x32xbf16>
    %cst_135 = arith.constant dense<0.000000e+00> : vector<16x32xf32>
    %354 = tpu.matmul %351, %353, %cst_135 {dimension_numbers = #tpu.dot_dimension_numbers<[1], [0], [0], [1], [0, 0, 1, 1], [], []>} : vector<16x64xbf16>, vector<64x32xbf16>, vector<16x32xf32> -> vector<16x32xf32>
    %c1_136 = arith.constant 1 : index
    %c0_137 = arith.constant 0 : index
    %c0_138 = arith.constant 0 : index
    %355 = vector.load %arg13[%c1_136, %c0_137, %c0_138] : memref<2x1x32xf32, #tpu.memory_space<vmem>>, vector<1x1x32xf32>
    %356 = vector.shape_cast %355 : vector<1x1x32xf32> to vector<1x32xf32>
    %357 = vector.broadcast %356 : vector<1x32xf32> to vector<16x32xf32>
    %358 = arith.addf %354, %357 : vector<16x32xf32>
    %359 = arith.addf %329, %358 : vector<16x32xf32>
    %c1_139 = arith.constant 1 : index
    %c0_140 = arith.constant 0 : index
    %c0_141 = arith.constant 0 : index
    %360 = vector.load %arg14[%c1_139, %c0_140, %c0_141] : memref<2x1x32xf32, #tpu.memory_space<vmem>>, vector<1x1x32xf32>
    %361 = vector.shape_cast %360 : vector<1x1x32xf32> to vector<1x32xf32>
    %c1_142 = arith.constant 1 : index
    %c0_143 = arith.constant 0 : index
    %c0_144 = arith.constant 0 : index
    %362 = vector.load %arg15[%c1_142, %c0_143, %c0_144] : memref<2x1x32xf32, #tpu.memory_space<vmem>>, vector<1x1x32xf32>
    %363 = vector.shape_cast %362 : vector<1x1x32xf32> to vector<1x32xf32>
    %cst_145 = arith.constant dense<0.000000e+00> : vector<16xf32>
    %364 = vector.multi_reduction <add>, %359, %cst_145 [1] : vector<16x32xf32> to vector<16xf32>
    %365 = vector.shape_cast %364 : vector<16xf32> to vector<16x1xf32>
    %cst_146 = arith.constant 3.200000e+01 : f32
    %366 = vector.broadcast %cst_146 : f32 to vector<16x1xf32>
    %367 = arith.divf %365, %366 : vector<16x1xf32>
    %368 = vector.broadcast %367 : vector<16x1xf32> to vector<16x32xf32>
    %369 = arith.subf %359, %368 : vector<16x32xf32>
    %370 = arith.mulf %369, %369 : vector<16x32xf32>
    %cst_147 = arith.constant dense<0.000000e+00> : vector<16xf32>
    %371 = vector.multi_reduction <add>, %370, %cst_147 [1] : vector<16x32xf32> to vector<16xf32>
    %372 = vector.shape_cast %371 : vector<16xf32> to vector<16x1xf32>
    %cst_148 = arith.constant 3.200000e+01 : f32
    %373 = vector.broadcast %cst_148 : f32 to vector<16x1xf32>
    %374 = arith.divf %372, %373 : vector<16x1xf32>
    %375 = vector.broadcast %367 : vector<16x1xf32> to vector<16x32xf32>
    %376 = arith.subf %359, %375 : vector<16x32xf32>
    %cst_149 = arith.constant 9.99999996E-13 : f32
    %377 = vector.broadcast %cst_149 : f32 to vector<16x1xf32>
    %378 = arith.addf %374, %377 : vector<16x1xf32>
    %379 = math.rsqrt %378 : vector<16x1xf32>
    %380 = vector.broadcast %379 : vector<16x1xf32> to vector<16x32xf32>
    %381 = arith.mulf %376, %380 : vector<16x32xf32>
    %382 = vector.broadcast %361 : vector<1x32xf32> to vector<16x32xf32>
    %383 = arith.mulf %381, %382 : vector<16x32xf32>
    %384 = vector.broadcast %363 : vector<1x32xf32> to vector<16x32xf32>
    %385 = arith.addf %383, %384 : vector<16x32xf32>
    %c0_150 = arith.constant 0 : index
    %c0_151 = arith.constant 0 : index
    %386 = vector.load %arg18[%c0_150, %c0_151] : memref<16x32xf32, #tpu.memory_space<vmem>>, vector<16x32xf32>
    tpu.vector_store %arg18[%c0_150, %c0_151], %385 {strides = array<i32>} : memref<16x32xf32, #tpu.memory_space<vmem>>, vector<16x32xf32>,
    %387 = vector.extract_strided_slice %385 {offsets = [0, 0], sizes = [1, 32], strides = [1, 1]} : vector<16x32xf32> to vector<1x32xf32>
    %388 = vector.extract_strided_slice %385 {offsets = [8, 0], sizes = [1, 32], strides = [1, 1]} : vector<16x32xf32> to vector<1x32xf32>
    %389 = tpu.concatenate %387, %388 in 0 : vector<1x32xf32>, vector<1x32xf32> -> vector<2x32xf32>
    %390 = arith.truncf %389 : vector<2x32xf32> to vector<2x32xbf16>
    %c0_152 = arith.constant 0 : index
    %c0_153 = arith.constant 0 : index
    %391 = vector.load %arg16[%c0_152, %c0_153] : memref<32x32xbf16, #tpu.memory_space<vmem>>, vector<32x32xbf16>
    %cst_154 = arith.constant dense<0.000000e+00> : vector<2x32xf32>
    %392 = tpu.matmul %390, %391, %cst_154 {dimension_numbers = #tpu.dot_dimension_numbers<[1], [0], [0], [1], [0, 0, 1, 1], [], []>} : vector<2x32xbf16>, vector<32x32xbf16>, vector<2x32xf32> -> vector<2x32xf32>
    %c0_155 = arith.constant 0 : index
    %c0_156 = arith.constant 0 : index
    %393 = vector.load %arg17[%c0_155, %c0_156] : memref<1x32xf32, #tpu.memory_space<vmem>>, vector<1x32xf32>
    %394 = vector.broadcast %393 : vector<1x32xf32> to vector<2x32xf32>
    %395 = arith.addf %392, %394 : vector<2x32xf32>
    %396 = math.tanh %395 : vector<2x32xf32>
    %c0_157 = arith.constant 0 : index
    %c0_158 = arith.constant 0 : index
    %397 = vector.load %arg19[%c0_157, %c0_158] : memref<2x32xf32, #tpu.memory_space<vmem>>, vector<2x32xf32>
    tpu.vector_store %arg19[%c0_157, %c0_158], %396 {strides = array<i32>} : memref<2x32xf32, #tpu.memory_space<vmem>>, vector<2x32xf32>,
    return
  }
}

</mosaic_0001>

<llo_original>
// kernel: bert_forward.1
$region0: #{bert_forward.1}
  #allocation0 [shape = 'u32[]', space=smem, size = 0x4, offset = 0x4, fixed_abs, tag = 'smem constant byte address 0x4 - core index']
  #allocation1 [shape = 'u32[144,128]{1,0:T(1,128)}', space=vmem, size = 0x12000, scoped, tag = 'internal scratch']
  %s0 = inlined_call_operand.vmem [shape: f32[16,32], index: 0, kind: input, shape index: {}]
  %s1 = inlined_call_operand.vmem [shape: f32[16,16], index: 1, kind: input, shape index: {}]
  %s2 = inlined_call_operand.vmem [shape: f32[1,32], index: 2, kind: input, shape index: {}]
  %s3 = inlined_call_operand.vmem [shape: f32[1,32], index: 3, kind: input, shape index: {}]
  %s4 = inlined_call_operand.vmem [shape: bf16[2,32,96], index: 4, kind: input, shape index: {}]
  %s5 = inlined_call_operand.vmem [shape: f32[2,1,96], index: 5, kind: input, shape index: {}]
  %s6 = inlined_call_operand.vmem [shape: bf16[2,32,32], index: 6, kind: input, shape index: {}]
  %s7 = inlined_call_operand.vmem [shape: f32[2,1,32], index: 7, kind: input, shape index: {}]
  %s8 = inlined_call_operand.vmem [shape: f32[2,1,32], index: 8, kind: input, shape index: {}]
  %s9 = inlined_call_operand.vmem [shape: f32[2,1,32], index: 9, kind: input, shape index: {}]
  %s10 = inlined_call_operand.vmem [shape: bf16[2,32,64], index: 10, kind: input, shape index: {}]
  %s11 = inlined_call_operand.vmem [shape: f32[2,1,64], index: 11, kind: input, shape index: {}]
  %s12 = inlined_call_operand.vmem [shape: bf16[2,64,32], index: 12, kind: input, shape index: {}]
  %s13 = inlined_call_operand.vmem [shape: f32[2,1,32], index: 13, kind: input, shape index: {}]
  %s14 = inlined_call_operand.vmem [shape: f32[2,1,32], index: 14, kind: input, shape index: {}]
  %s15 = inlined_call_operand.vmem [shape: f32[2,1,32], index: 15, kind: input, shape index: {}]
  %s16 = inlined_call_operand.vmem [shape: bf16[32,32], index: 16, kind: input, shape index: {}]
  %s17 = inlined_call_operand.vmem [shape: f32[1,32], index: 17, kind: input, shape index: {}]
  %s18 = inlined_call_operand.hbm [shape: f32[16,32], index: 18, kind: output, shape index: {0}]
  %s19 = inlined_call_operand.hbm [shape: f32[2,32], index: 19, kind: output, shape index: {1}]
  %20 = xla_tuple %s18, %s19
  %s21 = sld [smem:[#allocation0]]
  $region90: #{bert_forward.1} parent=0
    _
  %s23 = ssub.s32 1, %s21
  %s24 = scalar_select 0, %s23, %s21
  $region1: #{bert_forward.1} parent=0
    #allocation2 [shape = 'u8[8192]{0}', space=vmem, size = 0x2000, scoped, tag = 'output window, operand 0, single buffered']
    #allocation3 [shape = 's32[1]{0}', space=sflag, size = 0x4, scoped, tag = 'scoped memory for bert_forward.1']
    #allocation4 [shape = 'u8[1024]{0}', space=vmem, size = 0x400, scoped, tag = 'output window, operand 1, single buffered']
    #allocation5 [shape = 's32[1]{0}', space=sflag, size = 0x4, scoped, tag = 'scoped memory for bert_forward.1']
    %25 = vsyncpa [#allocation3], 0
    %26 = vsyncpa [#allocation5], 0
    // Predicated region
    $region2: #{bert_forward.1} parent=1 // pred_check
      _
    $region3: #{bert_forward.1} parent=1 // pred_check_branch
      %28 = sbr.rel (0) target = $region5
    $region4: #{bert_forward.1} parent=1 // pred_region
      _
    $region5: #{bert_forward.1} parent=1 // pred_fallthru
      _
    // Predicated region
    $region6: #{bert_forward.1} parent=1 // pred_check
      _
    $region7: #{bert_forward.1} parent=1 // pred_check_branch
      %30 = sbr.rel (0) target = $region9
    $region8: #{bert_forward.1} parent=1 // pred_region
      _
    $region9: #{bert_forward.1} parent=1 // pred_fallthru
      _
    // Predicated region
    $region10: #{bert_forward.1} parent=1 // pred_check
      _
    $region11: #{bert_forward.1} parent=1 // pred_check_branch
      %32 = sbr.rel (0) target = $region13
    $region12: #{bert_forward.1} parent=1 // pred_region
      _
    $region13: #{bert_forward.1} parent=1 // pred_fallthru
      _
    // Predicated region
    $region14: #{bert_forward.1} parent=1 // pred_check
      _
    $region15: #{bert_forward.1} parent=1 // pred_check_branch
      %34 = sbr.rel (0) target = $region17
    $region16: #{bert_forward.1} parent=1 // pred_region
      _
    $region17: #{bert_forward.1} parent=1 // pred_fallthru
      _
    // Predicated region
    $region18: #{bert_forward.1} parent=1 // pred_check
      _
    $region19: #{bert_forward.1} parent=1 // pred_check_branch
      %36 = sbr.rel (0) target = $region21
    $region20: #{bert_forward.1} parent=1 // pred_region
      _
    $region21: #{bert_forward.1} parent=1 // pred_fallthru
      _
    // Predicated region
    $region22: #{bert_forward.1} parent=1 // pred_check
      _
    $region23: #{bert_forward.1} parent=1 // pred_check_branch
      %38 = sbr.rel (0) target = $region25
    $region24: #{bert_forward.1} parent=1 // pred_region
      _
    $region25: #{bert_forward.1} parent=1 // pred_fallthru
      _
    // Predicated region
    $region26: #{bert_forward.1} parent=1 // pred_check
      _
    $region27: #{bert_forward.1} parent=1 // pred_check_branch
      %40 = sbr.rel (0) target = $region29
    $region28: #{bert_forward.1} parent=1 // pred_region
      _
    $region29: #{bert_forward.1} parent=1 // pred_fallthru
      _
    // Predicated region
    $region30: #{bert_forward.1} parent=1 // pred_check
      _
    $region31: #{bert_forward.1} parent=1 // pred_check_branch
      %42 = sbr.rel (0) target = $region33
    $region32: #{bert_forward.1} parent=1 // pred_region
      _
    $region33: #{bert_forward.1} parent=1 // pred_fallthru
      _
    // Predicated region
    $region34: #{bert_forward.1} parent=1 // pred_check
      _
    $region35: #{bert_forward.1} parent=1 // pred_check_branch
      %44 = sbr.rel (0) target = $region37
    $region36: #{bert_forward.1} parent=1 // pred_region
      _
    $region37: #{bert_forward.1} parent=1 // pred_fallthru
      _
    // Predicated region
    $region38: #{bert_forward.1} parent=1 // pred_check
      _
    $region39: #{bert_forward.1} parent=1 // pred_check_branch
      %46 = sbr.rel (0) target = $region41
    $region40: #{bert_forward.1} parent=1 // pred_region
      _
    $region41: #{bert_forward.1} parent=1 // pred_fallthru
      _
    // Predicated region
    $region42: #{bert_forward.1} parent=1 // pred_check
      _
    $region43: #{bert_forward.1} parent=1 // pred_check_branch
      %48 = sbr.rel (0) target = $region45
    $region44: #{bert_forward.1} parent=1 // pred_region
      _
    $region45: #{bert_forward.1} parent=1 // pred_fallthru
      _
    // Predicated region
    $region46: #{bert_forward.1} parent=1 // pred_check
      _
    $region47: #{bert_forward.1} parent=1 // pred_check_branch
      %50 = sbr.rel (0) target = $region49
    $region48: #{bert_forward.1} parent=1 // pred_region
      _
    $region49: #{bert_forward.1} parent=1 // pred_fallthru
      _
    // Predicated region
    $region50: #{bert_forward.1} parent=1 // pred_check
      _
    $region51: #{bert_forward.1} parent=1 // pred_check_branch
      %52 = sbr.rel (0) target = $region53
    $region52: #{bert_forward.1} parent=1 // pred_region
      _
    $region53: #{bert_forward.1} parent=1 // pred_fallthru
      _
    // Predicated region
    $region54: #{bert_forward.1} parent=1 // pred_check
      _
    $region55: #{bert_forward.1} parent=1 // pred_check_branch
      %54 = sbr.rel (0) target = $region57
    $region56: #{bert_forward.1} parent=1 // pred_region
      _
    $region57: #{bert_forward.1} parent=1 // pred_fallthru
      _
    // Predicated region
    $region58: #{bert_forward.1} parent=1 // pred_check
      _
    $region59: #{bert_forward.1} parent=1 // pred_check_branch
      %56 = sbr.rel (0) target = $region61
    $region60: #{bert_forward.1} parent=1 // pred_region
      _
    $region61: #{bert_forward.1} parent=1 // pred_fallthru
      _
    // Predicated region
    $region62: #{bert_forward.1} parent=1 // pred_check
      _
    $region63: #{bert_forward.1} parent=1 // pred_check_branch
      %58 = sbr.rel (0) target = $region65
    $region64: #{bert_forward.1} parent=1 // pred_region
      _
    $region65: #{bert_forward.1} parent=1 // pred_fallthru
      _
    // Predicated region
    $region66: #{bert_forward.1} parent=1 // pred_check
      _
    $region67: #{bert_forward.1} parent=1 // pred_check_branch
      %60 = sbr.rel (0) target = $region69
    $region68: #{bert_forward.1} parent=1 // pred_region
      _
    $region69: #{bert_forward.1} parent=1 // pred_fallthru
      _
    // Predicated region
    $region70: #{bert_forward.1} parent=1 // pred_check
      _
    $region71: #{bert_forward.1} parent=1 // pred_check_branch
      %62 = sbr.rel (0) target = $region73
    $region72: #{bert_forward.1} parent=1 // pred_region
      _
    $region73: #{bert_forward.1} parent=1 // pred_fallthru
      _
    %v64 = vld [vmem:[%s0] sm:$0xff]
    %v65 = vld [vmem:[%s0 + $0x8] sm:$0xff]
    %v66 = vld [vmem:[%s2] sm:$0x1]
    %v67 = vld [vmem:[%s3] sm:$0x1]
    %vm68 = vcmask 261120
    %v69 = vsel %vm68, %v64, 0.0
    %70 = vadd.xlane.f32.xlu0 %v69
    %v71 = vpop.xlane.xlu0 %70
    %v72 = vsel %vm68, %v65, 0.0
    %73 = vadd.xlane.f32.xlu0 %v72
    %v74 = vpop.xlane.xlu0 %73
    %v75 = vrcp.pop 32.0
    %v76 = vmul.f32 %v71, %v75
    %v77 = vmul.f32 %v74, %v75
    %v78 = vsub.f32 %v64, %v76
    %v79 = vsub.f32 %v65, %v77
    %v80 = vmul.f32 %v78, %v78
    %v81 = vmul.f32 %v79, %v79
    %v82 = vsel %vm68, %v80, 0.0
    %83 = vadd.xlane.f32.xlu0 %v82
    %v84 = vpop.xlane.xlu0 %83
    %v85 = vsel %vm68, %v81, 0.0
    %86 = vadd.xlane.f32.xlu0 %v85
    %v87 = vpop.xlane.xlu0 %86
    %v88 = vmul.f32 %v84, %v75
    %v89 = vmul.f32 %v87, %v75
    %v90 = vadd.f32 %v88, 1e-12
    %v91 = vadd.f32 %v89, 1e-12
    %v92 = vrsqrt.pop %v90
    %v93 = vrsqrt.pop %v91
    %v94 = vmul.f32 %v78, %v92
    %v95 = vmul.f32 %v79, %v93
    %v97 = vlaneseq
    %v98 = vshrl.u32 %v97, 7
    %v99 = vsub.s32 0, %v98
    %v100 = vrot.slane %v66, %v99
    %v102 = vmul.f32 %v94, %v100
    %v103 = vmul.f32 %v95, %v100
    %v105 = vlaneseq
    %v106 = vshrl.u32 %v105, 7
    %v107 = vsub.s32 0, %v106
    %v108 = vrot.slane %v67, %v107
    %v110 = vadd.f32 %v102, %v108
    %v111 = vadd.f32 %v103, %v108
    %v112 = vld [vmem:[%s1] sm:$0xff]
    %v113 = vld [vmem:[%s1 + $0x8] sm:$0xff]
    %v114 = vpack.c.bf16 %v111, %v110
    %v115 = vld [vmem:[%s4] sm:$0xf]
    %v116 = vld [vmem:[%s4 + $0x4] sm:$0xf]
    %v117 = vld [vmem:[%s4 + $0x8] sm:$0xf]
    %v118 = vld [vmem:[%s4 + $0xc] sm:$0xf]
    %v119 = vld [vmem:[%s5] sm:$0x1]
    %v121 = vlaneseq
    %v122 = vshrl.u32 %v121, 7
    %v123 = vsub.s32 0, %v122
    %v124 = vrot.slane %v119, %v123
    %v130 = vunpack.c.l.b16 %v115
    %v131 = vunpack.c.l.b16 %v116
    %v132 = vunpack.c.l.b16 %v117
    %v133 = vunpack.c.l.b16 %v118
    %v134 = vpack.c.b16 %v131, %v130
    %v135 = vpack.c.b16 %v133, %v132
    %v139 = vsel %vm68, %v114, 0
    %141 = vmatprep.subr.bf16.mxu0 0
    %142 = vmatpush1.bf16.msra.mxu0 %v134
    %143 = vmatprep.subr.bf16.mxu0 0
    %144 = vmatpush1.bf16.msra.mxu0 %v135
    %145 = vmatprep.subr.bf16.mxu0 0
    %146 = vmatpush1.bf16.msra.mxu0 0
    %147 = vmatprep.subr.bf16.mxu0 0
    %148 = vmatpush1.bf16.msra.mxu0 0
    %149 = vmatprep.subr.bf16.mxu0 0
    %150 = vmatpush1.bf16.msra.mxu0 0
    %151 = vmatprep.subr.bf16.mxu0 0
    %152 = vmatpush1.bf16.msra.mxu0 0
    %153 = vmatprep.subr.bf16.mxu0 0
    %154 = vmatpush1.bf16.msra.mxu0 0
    %155 = vmatprep.subr.bf16.mxu0 0
    %156 = vmatpush1.bf16.msra.mxu0 0
    %157 = vmatprep.subr.bf16.mxu0 0
    %158 = vmatpush1.bf16.msra.mxu0 0
    %159 = vmatprep.subr.bf16.mxu0 0
    %160 = vmatpush1.bf16.msra.mxu0 0
    %161 = vmatprep.subr.bf16.mxu0 0
    %162 = vmatpush1.bf16.msra.mxu0 0
    %163 = vmatprep.subr.bf16.mxu0 0
    %164 = vmatpush1.bf16.msra.mxu0 0
    %165 = vmatprep.subr.bf16.mxu0 0
    %166 = vmatpush1.bf16.msra.mxu0 0
    %167 = vmatprep.subr.bf16.mxu0 0
    %168 = vmatpush1.bf16.msra.mxu0 0
    %169 = vmatprep.subr.bf16.mxu0 0
    %170 = vmatpush1.bf16.msra.mxu0 0
    %171 = vmatprep.subr.bf16.mxu0 0
    %172 = vmatpush1.bf16.msra.mxu0 0
    %173 = vmatprep.mubr.bf16.mxu0 0
    %174 = vmatmul.mubr.bf16.gmra.mrb[0].mxu0 %v139
    %v175 = vpop.f32.mrb[0].mxu0
    %v176 = vadd.f32 %v124, %v175
    %v177 = vpop.f32.mrb[0].mxu0
    %v178 = vpop.f32.mrb[0].mxu0
    %v179 = vadd.f32 %v124, %v178
    %v180 = vpop.f32.mrb[0].mxu0
    %181 = vdwg.mxu0
    %v182 = vpack.c.bf16 %v179, %v176
    %184 = vrot.lane.b32.xlu0 %v182, 96
    %v185 = vpop.permute.xlu0 %184
    %vm186 = vcmask 64512
    %v188 = vsel %vm186, %v182, 0
    %v191 = vsel %vm186, %v185, 0
    %193 = vmatprep.subr.bf16.mxu0 0
    %194 = vmatpush1.bf16.xpose.msra.mxu0 %v191
    %195 = vmatprep.subr.bf16.mxu0 0
    %196 = vmatpush1.bf16.xpose.msra.mxu0 0
    %197 = vmatprep.subr.bf16.mxu0 0
    %198 = vmatpush1.bf16.xpose.msra.mxu0 0
    %199 = vmatprep.subr.bf16.mxu0 0
    %200 = vmatpush1.bf16.xpose.msra.mxu0 0
    %201 = vmatprep.subr.bf16.mxu0 0
    %202 = vmatpush1.bf16.xpose.msra.mxu0 0
    %203 = vmatprep.subr.bf16.mxu0 0
    %204 = vmatpush1.bf16.xpose.msra.mxu0 0
    %205 = vmatprep.subr.bf16.mxu0 0
    %206 = vmatpush1.bf16.xpose.msra.mxu0 0
    %207 = vmatprep.subr.bf16.mxu0 0
    %208 = vmatpush1.bf16.xpose.msra.mxu0 0
    %209 = vmatprep.subr.bf16.mxu0 0
    %210 = vmatpush1.bf16.xpose.msra.mxu0 0
    %211 = vmatprep.subr.bf16.mxu0 0
    %212 = vmatpush1.bf16.xpose.msra.mxu0 0
    %213 = vmatprep.subr.bf16.mxu0 0
    %214 = vmatpush1.bf16.xpose.msra.mxu0 0
    %215 = vmatprep.subr.bf16.mxu0 0
    %216 = vmatpush1.bf16.xpose.msra.mxu0 0
    %217 = vmatprep.subr.bf16.mxu0 0
    %218 = vmatpush1.bf16.xpose.msra.mxu0 0
    %219 = vmatprep.subr.bf16.mxu0 0
    %220 = vmatpush1.bf16.xpose.msra.mxu0 0
    %221 = vmatprep.subr.bf16.mxu0 0
    %222 = vmatpush1.bf16.xpose.msra.mxu0 0
    %223 = vmatprep.subr.bf16.mxu0 0
    %224 = vmatpush1.bf16.xpose.msra.mxu0 0
    %225 = vmatprep.mubr.bf16.mxu0 0
    %226 = vmatmul.mubr.bf16.gmra.mrb[0].mxu0 %v188
    %v227 = vpop.f32.mrb[0].mxu0
    %v228 = vadd.f32 %v112, %v227
    %v229 = vpop.f32.mrb[0].mxu0
    %v230 = vpop.f32.mrb[0].mxu0
    %v231 = vadd.f32 %v113, %v230
    %v232 = vpop.f32.mrb[0].mxu0
    %233 = vdwg.mxu0
    %vm234 = vcmask 130048
    %v235 = vsel %vm234, %v228, -inf
    %236 = vmax.xlane.f32.xlu0 %v235
    %v237 = vpop.xlane.xlu0 %236
    %v238 = vsel %vm234, %v231, -inf
    %239 = vmax.xlane.f32.xlu0 %v238
    %v240 = vpop.xlane.xlu0 %239
    %v241 = vsub.f32 %v228, %v237
    %v242 = vsub.f32 %v231, %v240
    %v243 = vmul.f32 %v241, 1.442695
    %v244 = vpow.pop %v243
    %v245 = vmul.f32 %v242, 1.442695
    %v246 = vpow.pop %v245
    %v247 = vsel %vm234, %v244, 0.0
    %248 = vadd.xlane.f32.xlu0 %v247
    %v249 = vpop.xlane.xlu0 %248
    %v250 = vsel %vm234, %v246, 0.0
    %251 = vadd.xlane.f32.xlu0 %v250
    %v252 = vpop.xlane.xlu0 %251
    %v253 = vrcp.pop %v249
    %v254 = vrcp.pop %v252
    %v255 = vmul.f32 %v244, %v253
    %v256 = vmul.f32 %v246, %v254
    %v257 = vpack.c.bf16 %v256, %v255
    %258 = vrot.lane.b32.xlu0 %v182, 64
    %v259 = vpop.permute.xlu0 %258
    %v262 = vsel %vm234, %v257, 0
    %264 = vmatprep.subr.bf16.mxu0 0
    %265 = vmatpush1.bf16.msra.mxu0 %v259
    %266 = vmatprep.subr.bf16.mxu0 0
    %267 = vmatpush1.bf16.msra.mxu0 0
    %268 = vmatprep.subr.bf16.mxu0 0
    %269 = vmatpush1.bf16.msra.mxu0 0
    %270 = vmatprep.subr.bf16.mxu0 0
    %271 = vmatpush1.bf16.msra.mxu0 0
    %272 = vmatprep.subr.bf16.mxu0 0
    %273 = vmatpush1.bf16.msra.mxu0 0
    %274 = vmatprep.subr.bf16.mxu0 0
    %275 = vmatpush1.bf16.msra.mxu0 0
    %276 = vmatprep.subr.bf16.mxu0 0
    %277 = vmatpush1.bf16.msra.mxu0 0
    %278 = vmatprep.subr.bf16.mxu0 0
    %279 = vmatpush1.bf16.msra.mxu0 0
    %280 = vmatprep.subr.bf16.mxu0 0
    %281 = vmatpush1.bf16.msra.mxu0 0
    %282 = vmatprep.subr.bf16.mxu0 0
    %283 = vmatpush1.bf16.msra.mxu0 0
    %284 = vmatprep.subr.bf16.mxu0 0
    %285 = vmatpush1.bf16.msra.mxu0 0
    %286 = vmatprep.subr.bf16.mxu0 0
    %287 = vmatpush1.bf16.msra.mxu0 0
    %288 = vmatprep.subr.bf16.mxu0 0
    %289 = vmatpush1.bf16.msra.mxu0 0
    %290 = vmatprep.subr.bf16.mxu0 0
    %291 = vmatpush1.bf16.msra.mxu0 0
    %292 = vmatprep.subr.bf16.mxu0 0
    %293 = vmatpush1.bf16.msra.mxu0 0
    %294 = vmatprep.subr.bf16.mxu0 0
    %295 = vmatpush1.bf16.msra.mxu0 0
    %296 = vmatprep.mubr.bf16.mxu0 0
    %297 = vmatmul.mubr.bf16.gmra.mrb[0].mxu0 %v262
    %v298 = vpop.f32.mrb[0].mxu0
    %v299 = vadd.f32 0.0, %v298
    %v300 = vpop.f32.mrb[0].mxu0
    %v301 = vpop.f32.mrb[0].mxu0
    %v302 = vadd.f32 0.0, %v301
    %v303 = vpop.f32.mrb[0].mxu0
    %304 = vdwg.mxu0
    %305 = vrot.lane.b32.xlu0 %v182, 120
    %v306 = vpop.permute.xlu0 %305
    %307 = vrot.lane.b32.xlu0 %v182, 88
    %v308 = vpop.permute.xlu0 %307
    %v310 = vsel %vm186, %v306, 0
    %v313 = vsel %vm186, %v308, 0
    %315 = vmatprep.subr.bf16.mxu0 0
    %316 = vmatpush1.bf16.xpose.msra.mxu0 %v313
    %317 = vmatprep.subr.bf16.mxu0 0
    %318 = vmatpush1.bf16.xpose.msra.mxu0 0
    %319 = vmatprep.subr.bf16.mxu0 0
    %320 = vmatpush1.bf16.xpose.msra.mxu0 0
    %321 = vmatprep.subr.bf16.mxu0 0
    %322 = vmatpush1.bf16.xpose.msra.mxu0 0
    %323 = vmatprep.subr.bf16.mxu0 0
    %324 = vmatpush1.bf16.xpose.msra.mxu0 0
    %325 = vmatprep.subr.bf16.mxu0 0
    %326 = vmatpush1.bf16.xpose.msra.mxu0 0
    %327 = vmatprep.subr.bf16.mxu0 0
    %328 = vmatpush1.bf16.xpose.msra.mxu0 0
    %329 = vmatprep.subr.bf16.mxu0 0
    %330 = vmatpush1.bf16.xpose.msra.mxu0 0
    %331 = vmatprep.subr.bf16.mxu0 0
    %332 = vmatpush1.bf16.xpose.msra.mxu0 0
    %333 = vmatprep.subr.bf16.mxu0 0
    %334 = vmatpush1.bf16.xpose.msra.mxu0 0
    %335 = vmatprep.subr.bf16.mxu0 0
    %336 = vmatpush1.bf16.xpose.msra.mxu0 0
    %337 = vmatprep.subr.bf16.mxu0 0
    %338 = vmatpush1.bf16.xpose.msra.mxu0 0
    %339 = vmatprep.subr.bf16.mxu0 0
    %340 = vmatpush1.bf16.xpose.msra.mxu0 0
    %341 = vmatprep.subr.bf16.mxu0 0
    %342 = vmatpush1.bf16.xpose.msra.mxu0 0
    %343 = vmatprep.subr.bf16.mxu0 0
    %344 = vmatpush1.bf16.xpose.msra.mxu0 0
    %345 = vmatprep.subr.bf16.mxu0 0
    %346 = vmatpush1.bf16.xpose.msra.mxu0 0
    %347 = vmatprep.mubr.bf16.mxu0 0
    %348 = vmatmul.mubr.bf16.gmra.mrb[0].mxu0 %v310
    %v349 = vpop.f32.mrb[0].mxu0
    %v350 = vadd.f32 %v112, %v349
    %v351 = vpop.f32.mrb[0].mxu0
    %v352 = vpop.f32.mrb[0].mxu0
    %v353 = vadd.f32 %v113, %v352
    %v354 = vpop.f32.mrb[0].mxu0
    %355 = vdwg.mxu0
    %v356 = vsel %vm234, %v350, -inf
    %357 = vmax.xlane.f32.xlu0 %v356
    %v358 = vpop.xlane.xlu0 %357
    %v359 = vsel %vm234, %v353, -inf
    %360 = vmax.xlane.f32.xlu0 %v359
    %v361 = vpop.xlane.xlu0 %360
    %v362 = vsub.f32 %v350, %v358
    %v363 = vsub.f32 %v353, %v361
    %v364 = vmul.f32 %v362, 1.442695
    %v365 = vpow.pop %v364
    %v366 = vmul.f32 %v363, 1.442695
    %v367 = vpow.pop %v366
    %v368 = vsel %vm234, %v365, 0.0
    %369 = vadd.xlane.f32.xlu0 %v368
    %v370 = vpop.xlane.xlu0 %369
    %v371 = vsel %vm234, %v367, 0.0
    %372 = vadd.xlane.f32.xlu0 %v371
    %v373 = vpop.xlane.xlu0 %372
    %v374 = vrcp.pop %v370
    %v375 = vrcp.pop %v373
    %v376 = vmul.f32 %v365, %v374
    %v377 = vmul.f32 %v367, %v375
    %v378 = vpack.c.bf16 %v377, %v376
    %379 = vrot.lane.b32.xlu0 %v182, 56
    %v380 = vpop.permute.xlu0 %379
    %v383 = vsel %vm234, %v378, 0
    %385 = vmatprep.subr.bf16.mxu0 0
    %386 = vmatpush1.bf16.msra.mxu0 %v380
    %387 = vmatprep.subr.bf16.mxu0 0
    %388 = vmatpush1.bf16.msra.mxu0 0
    %389 = vmatprep.subr.bf16.mxu0 0
    %390 = vmatpush1.bf16.msra.mxu0 0
    %391 = vmatprep.subr.bf16.mxu0 0
    %392 = vmatpush1.bf16.msra.mxu0 0
    %393 = vmatprep.subr.bf16.mxu0 0
    %394 = vmatpush1.bf16.msra.mxu0 0
    %395 = vmatprep.subr.bf16.mxu0 0
    %396 = vmatpush1.bf16.msra.mxu0 0
    %397 = vmatprep.subr.bf16.mxu0 0
    %398 = vmatpush1.bf16.msra.mxu0 0
    %399 = vmatprep.subr.bf16.mxu0 0
    %400 = vmatpush1.bf16.msra.mxu0 0
    %401 = vmatprep.subr.bf16.mxu0 0
    %402 = vmatpush1.bf16.msra.mxu0 0
    %403 = vmatprep.subr.bf16.mxu0 0
    %404 = vmatpush1.bf16.msra.mxu0 0
    %405 = vmatprep.subr.bf16.mxu0 0
    %406 = vmatpush1.bf16.msra.mxu0 0
    %407 = vmatprep.subr.bf16.mxu0 0
    %408 = vmatpush1.bf16.msra.mxu0 0
    %409 = vmatprep.subr.bf16.mxu0 0
    %410 = vmatpush1.bf16.msra.mxu0 0
    %411 = vmatprep.subr.bf16.mxu0 0
    %412 = vmatpush1.bf16.msra.mxu0 0
    %413 = vmatprep.subr.bf16.mxu0 0
    %414 = vmatpush1.bf16.msra.mxu0 0
    %415 = vmatprep.subr.bf16.mxu0 0
    %416 = vmatpush1.bf16.msra.mxu0 0
    %417 = vmatprep.mubr.bf16.mxu0 0
    %418 = vmatmul.mubr.bf16.gmra.mrb[0].mxu0 %v383
    %v419 = vpop.f32.mrb[0].mxu0
    %v420 = vadd.f32 0.0, %v419
    %v421 = vpop.f32.mrb[0].mxu0
    %v422 = vpop.f32.mrb[0].mxu0
    %v423 = vadd.f32 0.0, %v422
    %v424 = vpop.f32.mrb[0].mxu0
    %425 = vdwg.mxu0
    %426 = vrot.lane.b32.xlu0 %v182, 112
    %v427 = vpop.permute.xlu0 %426
    %428 = vrot.lane.b32.xlu0 %v182, 80
    %v429 = vpop.permute.xlu0 %428
    %v431 = vsel %vm186, %v427, 0
    %v434 = vsel %vm186, %v429, 0
    %436 = vmatprep.subr.bf16.mxu0 0
    %437 = vmatpush1.bf16.xpose.msra.mxu0 %v434
    %438 = vmatprep.subr.bf16.mxu0 0
    %439 = vmatpush1.bf16.xpose.msra.mxu0 0
    %440 = vmatprep.subr.bf16.mxu0 0
    %441 = vmatpush1.bf16.xpose.msra.mxu0 0
    %442 = vmatprep.subr.bf16.mxu0 0
    %443 = vmatpush1.bf16.xpose.msra.mxu0 0
    %444 = vmatprep.subr.bf16.mxu0 0
    %445 = vmatpush1.bf16.xpose.msra.mxu0 0
    %446 = vmatprep.subr.bf16.mxu0 0
    %447 = vmatpush1.bf16.xpose.msra.mxu0 0
    %448 = vmatprep.subr.bf16.mxu0 0
    %449 = vmatpush1.bf16.xpose.msra.mxu0 0
    %450 = vmatprep.subr.bf16.mxu0 0
    %451 = vmatpush1.bf16.xpose.msra.mxu0 0
    %452 = vmatprep.subr.bf16.mxu0 0
    %453 = vmatpush1.bf16.xpose.msra.mxu0 0
    %454 = vmatprep.subr.bf16.mxu0 0
    %455 = vmatpush1.bf16.xpose.msra.mxu0 0
    %456 = vmatprep.subr.bf16.mxu0 0
    %457 = vmatpush1.bf16.xpose.msra.mxu0 0
    %458 = vmatprep.subr.bf16.mxu0 0
    %459 = vmatpush1.bf16.xpose.msra.mxu0 0
    %460 = vmatprep.subr.bf16.mxu0 0
    %461 = vmatpush1.bf16.xpose.msra.mxu0 0
    %462 = vmatprep.subr.bf16.mxu0 0
    %463 = vmatpush1.bf16.xpose.msra.mxu0 0
    %464 = vmatprep.subr.bf16.mxu0 0
    %465 = vmatpush1.bf16.xpose.msra.mxu0 0
    %466 = vmatprep.subr.bf16.mxu0 0
    %467 = vmatpush1.bf16.xpose.msra.mxu0 0
    %468 = vmatprep.mubr.bf16.mxu0 0
    %469 = vmatmul.mubr.bf16.gmra.mrb[0].mxu0 %v431
    %v470 = vpop.f32.mrb[0].mxu0
    %v471 = vadd.f32 %v112, %v470
    %v472 = vpop.f32.mrb[0].mxu0
    %v473 = vpop.f32.mrb[0].mxu0
    %v474 = vadd.f32 %v113, %v473
    %v475 = vpop.f32.mrb[0].mxu0
    %476 = vdwg.mxu0
    %v477 = vsel %vm234, %v471, -inf
    %478 = vmax.xlane.f32.xlu0 %v477
    %v479 = vpop.xlane.xlu0 %478
    %v480 = vsel %vm234, %v474, -inf
    %481 = vmax.xlane.f32.xlu0 %v480
    %v482 = vpop.xlane.xlu0 %481
    %v483 = vsub.f32 %v471, %v479
    %v484 = vsub.f32 %v474, %v482
    %v485 = vmul.f32 %v483, 1.442695
    %v486 = vpow.pop %v485
    %v487 = vmul.f32 %v484, 1.442695
    %v488 = vpow.pop %v487
    %v489 = vsel %vm234, %v486, 0.0
    %490 = vadd.xlane.f32.xlu0 %v489
    %v491 = vpop.xlane.xlu0 %490
    %v492 = vsel %vm234, %v488, 0.0
    %493 = vadd.xlane.f32.xlu0 %v492
    %v494 = vpop.xlane.xlu0 %493
    %v495 = vrcp.pop %v491
    %v496 = vrcp.pop %v494
    %v497 = vmul.f32 %v486, %v495
    %v498 = vmul.f32 %v488, %v496
    %v499 = vpack.c.bf16 %v498, %v497
    %500 = vrot.lane.b32.xlu0 %v182, 48
    %v501 = vpop.permute.xlu0 %500
    %v504 = vsel %vm234, %v499, 0
    %506 = vmatprep.subr.bf16.mxu0 0
    %507 = vmatpush1.bf16.msra.mxu0 %v501
    %508 = vmatprep.subr.bf16.mxu0 0
    %509 = vmatpush1.bf16.msra.mxu0 0
    %510 = vmatprep.subr.bf16.mxu0 0
    %511 = vmatpush1.bf16.msra.mxu0 0
    %512 = vmatprep.subr.bf16.mxu0 0
    %513 = vmatpush1.bf16.msra.mxu0 0
    %514 = vmatprep.subr.bf16.mxu0 0
    %515 = vmatpush1.bf16.msra.mxu0 0
    %516 = vmatprep.subr.bf16.mxu0 0
    %517 = vmatpush1.bf16.msra.mxu0 0
    %518 = vmatprep.subr.bf16.mxu0 0
    %519 = vmatpush1.bf16.msra.mxu0 0
    %520 = vmatprep.subr.bf16.mxu0 0
    %521 = vmatpush1.bf16.msra.mxu0 0
    %522 = vmatprep.subr.bf16.mxu0 0
    %523 = vmatpush1.bf16.msra.mxu0 0
    %524 = vmatprep.subr.bf16.mxu0 0
    %525 = vmatpush1.bf16.msra.mxu0 0
    %526 = vmatprep.subr.bf16.mxu0 0
    %527 = vmatpush1.bf16.msra.mxu0 0
    %528 = vmatprep.subr.bf16.mxu0 0
    %529 = vmatpush1.bf16.msra.mxu0 0
    %530 = vmatprep.subr.bf16.mxu0 0
    %531 = vmatpush1.bf16.msra.mxu0 0
    %532 = vmatprep.subr.bf16.mxu0 0
    %533 = vmatpush1.bf16.msra.mxu0 0
    %534 = vmatprep.subr.bf16.mxu0 0
    %535 = vmatpush1.bf16.msra.mxu0 0
    %536 = vmatprep.subr.bf16.mxu0 0
    %537 = vmatpush1.bf16.msra.mxu0 0
    %538 = vmatprep.mubr.bf16.mxu0 0
    %539 = vmatmul.mubr.bf16.gmra.mrb[0].mxu0 %v504
    %v540 = vpop.f32.mrb[0].mxu0
    %v541 = vadd.f32 0.0, %v540
    %v542 = vpop.f32.mrb[0].mxu0
    %v543 = vpop.f32.mrb[0].mxu0
    %v544 = vadd.f32 0.0, %v543
    %v545 = vpop.f32.mrb[0].mxu0
    %546 = vdwg.mxu0
    %547 = vrot.lane.b32.xlu0 %v182, 104
    %v548 = vpop.permute.xlu0 %547
    %549 = vrot.lane.b32.xlu0 %v182, 72
    %v550 = vpop.permute.xlu0 %549
    %v552 = vsel %vm186, %v548, 0
    %v555 = vsel %vm186, %v550, 0
    %557 = vmatprep.subr.bf16.mxu0 0
    %558 = vmatpush1.bf16.xpose.msra.mxu0 %v555
    %559 = vmatprep.subr.bf16.mxu0 0
    %560 = vmatpush1.bf16.xpose.msra.mxu0 0
    %561 = vmatprep.subr.bf16.mxu0 0
    %562 = vmatpush1.bf16.xpose.msra.mxu0 0
    %563 = vmatprep.subr.bf16.mxu0 0
    %564 = vmatpush1.bf16.xpose.msra.mxu0 0
    %565 = vmatprep.subr.bf16.mxu0 0
    %566 = vmatpush1.bf16.xpose.msra.mxu0 0
    %567 = vmatprep.subr.bf16.mxu0 0
    %568 = vmatpush1.bf16.xpose.msra.mxu0 0
    %569 = vmatprep.subr.bf16.mxu0 0
    %570 = vmatpush1.bf16.xpose.msra.mxu0 0
    %571 = vmatprep.subr.bf16.mxu0 0
    %572 = vmatpush1.bf16.xpose.msra.mxu0 0
    %573 = vmatprep.subr.bf16.mxu0 0
    %574 = vmatpush1.bf16.xpose.msra.mxu0 0
    %575 = vmatprep.subr.bf16.mxu0 0
    %576 = vmatpush1.bf16.xpose.msra.mxu0 0
    %577 = vmatprep.subr.bf16.mxu0 0
    %578 = vmatpush1.bf16.xpose.msra.mxu0 0
    %579 = vmatprep.subr.bf16.mxu0 0
    %580 = vmatpush1.bf16.xpose.msra.mxu0 0
    %581 = vmatprep.subr.bf16.mxu0 0
    %582 = vmatpush1.bf16.xpose.msra.mxu0 0
    %583 = vmatprep.subr.bf16.mxu0 0
    %584 = vmatpush1.bf16.xpose.msra.mxu0 0
    %585 = vmatprep.subr.bf16.mxu0 0
    %586 = vmatpush1.bf16.xpose.msra.mxu0 0
    %587 = vmatprep.subr.bf16.mxu0 0
    %588 = vmatpush1.bf16.xpose.msra.mxu0 0
    %589 = vmatprep.mubr.bf16.mxu0 0
    %590 = vmatmul.mubr.bf16.gmra.mrb[0].mxu0 %v552
    %v591 = vpop.f32.mrb[0].mxu0
    %v592 = vadd.f32 %v112, %v591
    %v593 = vpop.f32.mrb[0].mxu0
    %v594 = vpop.f32.mrb[0].mxu0
    %v595 = vadd.f32 %v113, %v594
    %v596 = vpop.f32.mrb[0].mxu0
    %597 = vdwg.mxu0
    %v598 = vsel %vm234, %v592, -inf
    %599 = vmax.xlane.f32.xlu0 %v598
    %v600 = vpop.xlane.xlu0 %599
    %v601 = vsel %vm234, %v595, -inf
    %602 = vmax.xlane.f32.xlu0 %v601
    %v603 = vpop.xlane.xlu0 %602
    %v604 = vsub.f32 %v592, %v600
    %v605 = vsub.f32 %v595, %v603
    %v606 = vmul.f32 %v604, 1.442695
    %v607 = vpow.pop %v606
    %v608 = vmul.f32 %v605, 1.442695
    %v609 = vpow.pop %v608
    %v610 = vsel %vm234, %v607, 0.0
    %611 = vadd.xlane.f32.xlu0 %v610
    %v612 = vpop.xlane.xlu0 %611
    %v613 = vsel %vm234, %v609, 0.0
    %614 = vadd.xlane.f32.xlu0 %v613
    %v615 = vpop.xlane.xlu0 %614
    %v616 = vrcp.pop %v612
    %v617 = vrcp.pop %v615
    %v618 = vmul.f32 %v607, %v616
    %v619 = vmul.f32 %v609, %v617
    %v620 = vpack.c.bf16 %v619, %v618
    %621 = vrot.lane.b32.xlu0 %v182, 40
    %v622 = vpop.permute.xlu0 %621
    %v625 = vsel %vm234, %v620, 0
    %627 = vmatprep.subr.bf16.mxu0 0
    %628 = vmatpush1.bf16.msra.mxu0 %v622
    %629 = vmatprep.subr.bf16.mxu0 0
    %630 = vmatpush1.bf16.msra.mxu0 0
    %631 = vmatprep.subr.bf16.mxu0 0
    %632 = vmatpush1.bf16.msra.mxu0 0
    %633 = vmatprep.subr.bf16.mxu0 0
    %634 = vmatpush1.bf16.msra.mxu0 0
    %635 = vmatprep.subr.bf16.mxu0 0
    %636 = vmatpush1.bf16.msra.mxu0 0
    %637 = vmatprep.subr.bf16.mxu0 0
    %638 = vmatpush1.bf16.msra.mxu0 0
    %639 = vmatprep.subr.bf16.mxu0 0
    %640 = vmatpush1.bf16.msra.mxu0 0
    %641 = vmatprep.subr.bf16.mxu0 0
    %642 = vmatpush1.bf16.msra.mxu0 0
    %643 = vmatprep.subr.bf16.mxu0 0
    %644 = vmatpush1.bf16.msra.mxu0 0
    %645 = vmatprep.subr.bf16.mxu0 0
    %646 = vmatpush1.bf16.msra.mxu0 0
    %647 = vmatprep.subr.bf16.mxu0 0
    %648 = vmatpush1.bf16.msra.mxu0 0
    %649 = vmatprep.subr.bf16.mxu0 0
    %650 = vmatpush1.bf16.msra.mxu0 0
    %651 = vmatprep.subr.bf16.mxu0 0
    %652 = vmatpush1.bf16.msra.mxu0 0
    %653 = vmatprep.subr.bf16.mxu0 0
    %654 = vmatpush1.bf16.msra.mxu0 0
    %655 = vmatprep.subr.bf16.mxu0 0
    %656 = vmatpush1.bf16.msra.mxu0 0
    %657 = vmatprep.subr.bf16.mxu0 0
    %658 = vmatpush1.bf16.msra.mxu0 0
    %659 = vmatprep.mubr.bf16.mxu0 0
    %660 = vmatmul.mubr.bf16.gmra.mrb[0].mxu0 %v625
    %v661 = vpop.f32.mrb[0].mxu0
    %v662 = vadd.f32 0.0, %v661
    %v663 = vpop.f32.mrb[0].mxu0
    %v664 = vpop.f32.mrb[0].mxu0
    %v665 = vadd.f32 0.0, %v664
    %v666 = vpop.f32.mrb[0].mxu0
    %667 = vdwg.mxu0
    %670 = vrot.lane.b32.xlu0 %v420, 8
    %v671 = vpop.permute.xlu0 %670
    %672 = vrot.lane.b32.xlu0 %v423, 8
    %v673 = vpop.permute.xlu0 %672
    %678 = vrot.lane.b32.xlu0 %v541, 16
    %v679 = vpop.permute.xlu0 %678
    %680 = vrot.lane.b32.xlu0 %v544, 16
    %v681 = vpop.permute.xlu0 %680
    %686 = vrot.lane.b32.xlu0 %v662, 24
    %v687 = vpop.permute.xlu0 %686
    %688 = vrot.lane.b32.xlu0 %v665, 24
    %v689 = vpop.permute.xlu0 %688
    %v692 = vsel %vm186, %v299, %v671
    %v693 = vsel %vm186, %v302, %v673
    %v694 = vsel %vm234, %v692, %v679
    %v695 = vsel %vm234, %v693, %v681
    %vm696 = vcmask 195584
    %v697 = vsel %vm696, %v694, %v687
    %v698 = vsel %vm696, %v695, %v689
    %v699 = vpack.c.bf16 %v698, %v697
    %v700 = vld [vmem:[%s6] sm:$0xf]
    %v701 = vld [vmem:[%s6 + $0x4] sm:$0xf]
    %v702 = vld [vmem:[%s6 + $0x8] sm:$0xf]
    %v703 = vld [vmem:[%s6 + $0xc] sm:$0xf]
    %v704 = vld [vmem:[%s7] sm:$0x1]
    %v706 = vlaneseq
    %v707 = vshrl.u32 %v706, 7
    %v708 = vsub.s32 0, %v707
    %v709 = vrot.slane %v704, %v708
    %v715 = vunpack.c.l.b16 %v700
    %v716 = vunpack.c.l.b16 %v701
    %v717 = vunpack.c.l.b16 %v702
    %v718 = vunpack.c.l.b16 %v703
    %v719 = vpack.c.b16 %v716, %v715
    %v720 = vpack.c.b16 %v718, %v717
    %v724 = vsel %vm68, %v699, 0
    %726 = vmatprep.subr.bf16.mxu0 0
    %727 = vmatpush1.bf16.msra.mxu0 %v719
    %728 = vmatprep.subr.bf16.mxu0 0
    %729 = vmatpush1.bf16.msra.mxu0 %v720
    %730 = vmatprep.subr.bf16.mxu0 0
    %731 = vmatpush1.bf16.msra.mxu0 0
    %732 = vmatprep.subr.bf16.mxu0 0
    %733 = vmatpush1.bf16.msra.mxu0 0
    %734 = vmatprep.subr.bf16.mxu0 0
    %735 = vmatpush1.bf16.msra.mxu0 0
    %736 = vmatprep.subr.bf16.mxu0 0
    %737 = vmatpush1.bf16.msra.mxu0 0
    %738 = vmatprep.subr.bf16.mxu0 0
    %739 = vmatpush1.bf16.msra.mxu0 0
    %740 = vmatprep.subr.bf16.mxu0 0
    %741 = vmatpush1.bf16.msra.mxu0 0
    %742 = vmatprep.subr.bf16.mxu0 0
    %743 = vmatpush1.bf16.msra.mxu0 0
    %744 = vmatprep.subr.bf16.mxu0 0
    %745 = vmatpush1.bf16.msra.mxu0 0
    %746 = vmatprep.subr.bf16.mxu0 0
    %747 = vmatpush1.bf16.msra.mxu0 0
    %748 = vmatprep.subr.bf16.mxu0 0
    %749 = vmatpush1.bf16.msra.mxu0 0
    %750 = vmatprep.subr.bf16.mxu0 0
    %751 = vmatpush1.bf16.msra.mxu0 0
    %752 = vmatprep.subr.bf16.mxu0 0
    %753 = vmatpush1.bf16.msra.mxu0 0
    %754 = vmatprep.subr.bf16.mxu0 0
    %755 = vmatpush1.bf16.msra.mxu0 0
    %756 = vmatprep.subr.bf16.mxu0 0
    %757 = vmatpush1.bf16.msra.mxu0 0
    %758 = vmatprep.mubr.bf16.mxu0 0
    %759 = vmatmul.mubr.bf16.gmra.mrb[0].mxu0 %v724
    %v760 = vpop.f32.mrb[0].mxu0
    %v761 = vadd.f32 %v709, %v760
    %v762 = vpop.f32.mrb[0].mxu0
    %v763 = vpop.f32.mrb[0].mxu0
    %v764 = vadd.f32 %v709, %v763
    %v765 = vpop.f32.mrb[0].mxu0
    %766 = vdwg.mxu0
    %v767 = vadd.f32 %v110, %v761
    %v768 = vadd.f32 %v111, %v764
    %v769 = vld [vmem:[%s8] sm:$0x1]
    %v770 = vld [vmem:[%s9] sm:$0x1]
    %v771 = vsel %vm68, %v767, 0.0
    %772 = vadd.xlane.f32.xlu0 %v771
    %v773 = vpop.xlane.xlu0 %772
    %v774 = vsel %vm68, %v768, 0.0
    %775 = vadd.xlane.f32.xlu0 %v774
    %v776 = vpop.xlane.xlu0 %775
    %v777 = vmul.f32 %v773, %v75
    %v778 = vmul.f32 %v776, %v75
    %v779 = vsub.f32 %v767, %v777
    %v780 = vsub.f32 %v768, %v778
    %v781 = vmul.f32 %v779, %v779
    %v782 = vmul.f32 %v780, %v780
    %v783 = vsel %vm68, %v781, 0.0
    %784 = vadd.xlane.f32.xlu0 %v783
    %v785 = vpop.xlane.xlu0 %784
    %v786 = vsel %vm68, %v782, 0.0
    %787 = vadd.xlane.f32.xlu0 %v786
    %v788 = vpop.xlane.xlu0 %787
    %v789 = vmul.f32 %v785, %v75
    %v790 = vmul.f32 %v788, %v75
    %v791 = vadd.f32 %v789, 1e-12
    %v792 = vadd.f32 %v790, 1e-12
    %v793 = vrsqrt.pop %v791
    %v794 = vrsqrt.pop %v792
    %v795 = vmul.f32 %v779, %v793
    %v796 = vmul.f32 %v780, %v794
    %v798 = vlaneseq
    %v799 = vshrl.u32 %v798, 7
    %v800 = vsub.s32 0, %v799
    %v801 = vrot.slane %v769, %v800
    %v803 = vmul.f32 %v795, %v801
    %v804 = vmul.f32 %v796, %v801
    %v806 = vlaneseq
    %v807 = vshrl.u32 %v806, 7
    %v808 = vsub.s32 0, %v807
    %v809 = vrot.slane %v770, %v808
    %v811 = vadd.f32 %v803, %v809
    %v812 = vadd.f32 %v804, %v809
    %v813 = vpack.c.bf16 %v812, %v811
    %v814 = vld [vmem:[%s10] sm:$0xf]
    %v815 = vld [vmem:[%s10 + $0x4] sm:$0xf]
    %v816 = vld [vmem:[%s10 + $0x8] sm:$0xf]
    %v817 = vld [vmem:[%s10 + $0xc] sm:$0xf]
    %v818 = vld [vmem:[%s11] sm:$0x1]
    %v820 = vlaneseq
    %v821 = vshrl.u32 %v820, 7
    %v822 = vsub.s32 0, %v821
    %v823 = vrot.slane %v818, %v822
    %v829 = vunpack.c.l.b16 %v814
    %v830 = vunpack.c.l.b16 %v815
    %v831 = vunpack.c.l.b16 %v816
    %v832 = vunpack.c.l.b16 %v817
    %v833 = vpack.c.b16 %v830, %v829
    %v834 = vpack.c.b16 %v832, %v831
    %v838 = vsel %vm68, %v813, 0
    %840 = vmatprep.subr.bf16.mxu0 0
    %841 = vmatpush1.bf16.msra.mxu0 %v833
    %842 = vmatprep.subr.bf16.mxu0 0
    %843 = vmatpush1.bf16.msra.mxu0 %v834
    %844 = vmatprep.subr.bf16.mxu0 0
    %845 = vmatpush1.bf16.msra.mxu0 0
    %846 = vmatprep.subr.bf16.mxu0 0
    %847 = vmatpush1.bf16.msra.mxu0 0
    %848 = vmatprep.subr.bf16.mxu0 0
    %849 = vmatpush1.bf16.msra.mxu0 0
    %850 = vmatprep.subr.bf16.mxu0 0
    %851 = vmatpush1.bf16.msra.mxu0 0
    %852 = vmatprep.subr.bf16.mxu0 0
    %853 = vmatpush1.bf16.msra.mxu0 0
    %854 = vmatprep.subr.bf16.mxu0 0
    %855 = vmatpush1.bf16.msra.mxu0 0
    %856 = vmatprep.subr.bf16.mxu0 0
    %857 = vmatpush1.bf16.msra.mxu0 0
    %858 = vmatprep.subr.bf16.mxu0 0
    %859 = vmatpush1.bf16.msra.mxu0 0
    %860 = vmatprep.subr.bf16.mxu0 0
    %861 = vmatpush1.bf16.msra.mxu0 0
    %862 = vmatprep.subr.bf16.mxu0 0
    %863 = vmatpush1.bf16.msra.mxu0 0
    %864 = vmatprep.subr.bf16.mxu0 0
    %865 = vmatpush1.bf16.msra.mxu0 0
    %866 = vmatprep.subr.bf16.mxu0 0
    %867 = vmatpush1.bf16.msra.mxu0 0
    %868 = vmatprep.subr.bf16.mxu0 0
    %869 = vmatpush1.bf16.msra.mxu0 0
    %870 = vmatprep.subr.bf16.mxu0 0
    %871 = vmatpush1.bf16.msra.mxu0 0
    %872 = vmatprep.mubr.bf16.mxu0 0
    %873 = vmatmul.mubr.bf16.gmra.mrb[0].mxu0 %v838
    %v874 = vpop.f32.mrb[0].mxu0
    %v875 = vadd.f32 %v823, %v874
    %v876 = vpop.f32.mrb[0].mxu0
    %v877 = vpop.f32.mrb[0].mxu0
    %v878 = vadd.f32 %v823, %v877
    %v879 = vpop.f32.mrb[0].mxu0
    %880 = vdwg.mxu0
    %v881 = vmul.f32 %v875, %v875
    %v882 = vmul.f32 %v878, %v878
    %v883 = vmul.f32 %v875, %v881
    %v884 = vmul.f32 %v878, %v882
    %v885 = vmul.f32 %v883, 0.044715
    %v886 = vmul.f32 %v884, 0.044715
    %v887 = vadd.f32 %v875, %v885
    %v888 = vadd.f32 %v878, %v886
    %v889 = vmul.f32 %v887, 0.7978846
    %v890 = vmul.f32 %v888, 0.7978846
    %v891 = vtanh.pop %v889
    %v892 = vtanh.pop %v890
    %v893 = vadd.f32 %v891, 1.0
    %v894 = vadd.f32 %v892, 1.0
    %v895 = vmul.f32 %v893, 0.5
    %v896 = vmul.f32 %v894, 0.5
    %v897 = vmul.f32 %v875, %v895
    %v898 = vmul.f32 %v878, %v896
    %v899 = vpack.c.bf16 %v898, %v897
    %v900 = vld [vmem:[%s12] sm:$0xf]
    %v901 = vld [vmem:[%s12 + $0x4] sm:$0xf]
    %v902 = vld [vmem:[%s12 + $0x8] sm:$0xf]
    %v903 = vld [vmem:[%s12 + $0xc] sm:$0xf]
    %v904 = vld [vmem:[%s12 + $0x10] sm:$0xf]
    %v905 = vld [vmem:[%s12 + $0x14] sm:$0xf]
    %v906 = vld [vmem:[%s12 + $0x18] sm:$0xf]
    %v907 = vld [vmem:[%s12 + $0x1c] sm:$0xf]
    %v908 = vld [vmem:[%s13] sm:$0x1]
    %v910 = vlaneseq
    %v911 = vshrl.u32 %v910, 7
    %v912 = vsub.s32 0, %v911
    %v913 = vrot.slane %v908, %v912
    %v923 = vunpack.c.l.b16 %v900
    %v924 = vunpack.c.l.b16 %v901
    %v925 = vunpack.c.l.b16 %v902
    %v926 = vunpack.c.l.b16 %v903
    %v927 = vunpack.c.l.b16 %v904
    %v928 = vunpack.c.l.b16 %v905
    %v929 = vunpack.c.l.b16 %v906
    %v930 = vunpack.c.l.b16 %v907
    %v931 = vpack.c.b16 %v924, %v923
    %v932 = vpack.c.b16 %v926, %v925
    %v933 = vpack.c.b16 %v928, %v927
    %v934 = vpack.c.b16 %v930, %v929
    %vm939 = vcmask 523264
    %v941 = vsel %vm939, %v899, 0
    %943 = vmatprep.subr.bf16.mxu0 0
    %944 = vmatpush1.bf16.msra.mxu0 %v931
    %945 = vmatprep.subr.bf16.mxu0 0
    %946 = vmatpush1.bf16.msra.mxu0 %v932
    %947 = vmatprep.subr.bf16.mxu0 0
    %948 = vmatpush1.bf16.msra.mxu0 %v933
    %949 = vmatprep.subr.bf16.mxu0 0
    %950 = vmatpush1.bf16.msra.mxu0 %v934
    %951 = vmatprep.subr.bf16.mxu0 0
    %952 = vmatpush1.bf16.msra.mxu0 0
    %953 = vmatprep.subr.bf16.mxu0 0
    %954 = vmatpush1.bf16.msra.mxu0 0
    %955 = vmatprep.subr.bf16.mxu0 0
    %956 = vmatpush1.bf16.msra.mxu0 0
    %957 = vmatprep.subr.bf16.mxu0 0
    %958 = vmatpush1.bf16.msra.mxu0 0
    %959 = vmatprep.subr.bf16.mxu0 0
    %960 = vmatpush1.bf16.msra.mxu0 0
    %961 = vmatprep.subr.bf16.mxu0 0
    %962 = vmatpush1.bf16.msra.mxu0 0
    %963 = vmatprep.subr.bf16.mxu0 0
    %964 = vmatpush1.bf16.msra.mxu0 0
    %965 = vmatprep.subr.bf16.mxu0 0
    %966 = vmatpush1.bf16.msra.mxu0 0
    %967 = vmatprep.subr.bf16.mxu0 0
    %968 = vmatpush1.bf16.msra.mxu0 0
    %969 = vmatprep.subr.bf16.mxu0 0
    %970 = vmatpush1.bf16.msra.mxu0 0
    %971 = vmatprep.subr.bf16.mxu0 0
    %972 = vmatpush1.bf16.msra.mxu0 0
    %973 = vmatprep.subr.bf16.mxu0 0
    %974 = vmatpush1.bf16.msra.mxu0 0
    %975 = vmatprep.mubr.bf16.mxu0 0
    %976 = vmatmul.mubr.bf16.gmra.mrb[0].mxu0 %v941
    %v977 = vpop.f32.mrb[0].mxu0
    %v978 = vadd.f32 %v913, %v977
    %v979 = vpop.f32.mrb[0].mxu0
    %v980 = vpop.f32.mrb[0].mxu0
    %v981 = vadd.f32 %v913, %v980
    %v982 = vpop.f32.mrb[0].mxu0
    %983 = vdwg.mxu0
    %v984 = vadd.f32 %v811, %v978
    %v985 = vadd.f32 %v812, %v981
    %v986 = vld [vmem:[%s14] sm:$0x1]
    %v987 = vld [vmem:[%s15] sm:$0x1]
    %v988 = vsel %vm68, %v984, 0.0
    %989 = vadd.xlane.f32.xlu0 %v988
    %v990 = vpop.xlane.xlu0 %989
    %v991 = vsel %vm68, %v985, 0.0
    %992 = vadd.xlane.f32.xlu0 %v991
    %v993 = vpop.xlane.xlu0 %992
    %v994 = vmul.f32 %v990, %v75
    %v995 = vmul.f32 %v993, %v75
    %v996 = vsub.f32 %v984, %v994
    %v997 = vsub.f32 %v985, %v995
    %v998 = vmul.f32 %v996, %v996
    %v999 = vmul.f32 %v997, %v997
    %v1000 = vsel %vm68, %v998, 0.0
    %1001 = vadd.xlane.f32.xlu0 %v1000
    %v1002 = vpop.xlane.xlu0 %1001
    %v1003 = vsel %vm68, %v999, 0.0
    %1004 = vadd.xlane.f32.xlu0 %v1003
    %v1005 = vpop.xlane.xlu0 %1004
    %v1006 = vmul.f32 %v1002, %v75
    %v1007 = vmul.f32 %v1005, %v75
    %v1008 = vadd.f32 %v1006, 1e-12
    %v1009 = vadd.f32 %v1007, 1e-12
    %v1010 = vrsqrt.pop %v1008
    %v1011 = vrsqrt.pop %v1009
    %v1012 = vmul.f32 %v996, %v1010
    %v1013 = vmul.f32 %v997, %v1011
    %v1015 = vlaneseq
    %v1016 = vshrl.u32 %v1015, 7
    %v1017 = vsub.s32 0, %v1016
    %v1018 = vrot.slane %v986, %v1017
    %v1020 = vmul.f32 %v1012, %v1018
    %v1021 = vmul.f32 %v1013, %v1018
    %v1023 = vlaneseq
    %v1024 = vshrl.u32 %v1023, 7
    %v1025 = vsub.s32 0, %v1024
    %v1026 = vrot.slane %v987, %v1025
    %v1028 = vadd.f32 %v1020, %v1026
    %v1029 = vadd.f32 %v1021, %v1026
    %v1030 = vpack.c.bf16 %v1029, %v1028
    %s1031 = scalar_lea.vmem %s4, 16
    %v1032 = vld [vmem:[%s1031] sm:$0xf]
    %v1033 = vld [vmem:[%s1031 + $0x4] sm:$0xf]
    %v1034 = vld [vmem:[%s1031 + $0x8] sm:$0xf]
    %v1035 = vld [vmem:[%s1031 + $0xc] sm:$0xf]
    %s1036 = scalar_lea.vmem %s5, 1
    %v1037 = vld [vmem:[%s1036] sm:$0x1]
    %v1039 = vlaneseq
    %v1040 = vshrl.u32 %v1039, 7
    %v1041 = vsub.s32 0, %v1040
    %v1042 = vrot.slane %v1037, %v1041
    %v1048 = vunpack.c.l.b16 %v1032
    %v1049 = vunpack.c.l.b16 %v1033
    %v1050 = vunpack.c.l.b16 %v1034
    %v1051 = vunpack.c.l.b16 %v1035
    %v1052 = vpack.c.b16 %v1049, %v1048
    %v1053 = vpack.c.b16 %v1051, %v1050
    %v1057 = vsel %vm68, %v1030, 0
    %1059 = vmatprep.subr.bf16.mxu0 0
    %1060 = vmatpush1.bf16.msra.mxu0 %v1052
    %1061 = vmatprep.subr.bf16.mxu0 0
    %1062 = vmatpush1.bf16.msra.mxu0 %v1053
    %1063 = vmatprep.subr.bf16.mxu0 0
    %1064 = vmatpush1.bf16.msra.mxu0 0
    %1065 = vmatprep.subr.bf16.mxu0 0
    %1066 = vmatpush1.bf16.msra.mxu0 0
    %1067 = vmatprep.subr.bf16.mxu0 0
    %1068 = vmatpush1.bf16.msra.mxu0 0
    %1069 = vmatprep.subr.bf16.mxu0 0
    %1070 = vmatpush1.bf16.msra.mxu0 0
    %1071 = vmatprep.subr.bf16.mxu0 0
    %1072 = vmatpush1.bf16.msra.mxu0 0
    %1073 = vmatprep.subr.bf16.mxu0 0
    %1074 = vmatpush1.bf16.msra.mxu0 0
    %1075 = vmatprep.subr.bf16.mxu0 0
    %1076 = vmatpush1.bf16.msra.mxu0 0
    %1077 = vmatprep.subr.bf16.mxu0 0
    %1078 = vmatpush1.bf16.msra.mxu0 0
    %1079 = vmatprep.subr.bf16.mxu0 0
    %1080 = vmatpush1.bf16.msra.mxu0 0
    %1081 = vmatprep.subr.bf16.mxu0 0
    %1082 = vmatpush1.bf16.msra.mxu0 0
    %1083 = vmatprep.subr.bf16.mxu0 0
    %1084 = vmatpush1.bf16.msra.mxu0 0
    %1085 = vmatprep.subr.bf16.mxu0 0
    %1086 = vmatpush1.bf16.msra.mxu0 0
    %1087 = vmatprep.subr.bf16.mxu0 0
    %1088 = vmatpush1.bf16.msra.mxu0 0
    %1089 = vmatprep.subr.bf16.mxu0 0
    %1090 = vmatpush1.bf16.msra.mxu0 0
    %1091 = vmatprep.mubr.bf16.mxu0 0
    %1092 = vmatmul.mubr.bf16.gmra.mrb[0].mxu0 %v1057
    %v1093 = vpop.f32.mrb[0].mxu0
    %v1094 = vadd.f32 %v1042, %v1093
    %v1095 = vpop.f32.mrb[0].mxu0
    %v1096 = vpop.f32.mrb[0].mxu0
    %v1097 = vadd.f32 %v1042, %v1096
    %v1098 = vpop.f32.mrb[0].mxu0
    %1099 = vdwg.mxu0
    %v1100 = vpack.c.bf16 %v1097, %v1094
    %1102 = vrot.lane.b32.xlu0 %v1100, 96
    %v1103 = vpop.permute.xlu0 %1102
    %v1105 = vsel %vm186, %v1100, 0
    %v1108 = vsel %vm186, %v1103, 0
    %1110 = vmatprep.subr.bf16.mxu0 0
    %1111 = vmatpush1.bf16.xpose.msra.mxu0 %v1108
    %1112 = vmatprep.subr.bf16.mxu0 0
    %1113 = vmatpush1.bf16.xpose.msra.mxu0 0
    %1114 = vmatprep.subr.bf16.mxu0 0
    %1115 = vmatpush1.bf16.xpose.msra.mxu0 0
    %1116 = vmatprep.subr.bf16.mxu0 0
    %1117 = vmatpush1.bf16.xpose.msra.mxu0 0
    %1118 = vmatprep.subr.bf16.mxu0 0
    %1119 = vmatpush1.bf16.xpose.msra.mxu0 0
    %1120 = vmatprep.subr.bf16.mxu0 0
    %1121 = vmatpush1.bf16.xpose.msra.mxu0 0
    %1122 = vmatprep.subr.bf16.mxu0 0
    %1123 = vmatpush1.bf16.xpose.msra.mxu0 0
    %1124 = vmatprep.subr.bf16.mxu0 0
    %1125 = vmatpush1.bf16.xpose.msra.mxu0 0
    %1126 = vmatprep.subr.bf16.mxu0 0
    %1127 = vmatpush1.bf16.xpose.msra.mxu0 0
    %1128 = vmatprep.subr.bf16.mxu0 0
    %1129 = vmatpush1.bf16.xpose.msra.mxu0 0
    %1130 = vmatprep.subr.bf16.mxu0 0
    %1131 = vmatpush1.bf16.xpose.msra.mxu0 0
    %1132 = vmatprep.subr.bf16.mxu0 0
    %1133 = vmatpush1.bf16.xpose.msra.mxu0 0
    %1134 = vmatprep.subr.bf16.mxu0 0
    %1135 = vmatpush1.bf16.xpose.msra.mxu0 0
    %1136 = vmatprep.subr.bf16.mxu0 0
    %1137 = vmatpush1.bf16.xpose.msra.mxu0 0
    %1138 = vmatprep.subr.bf16.mxu0 0
    %1139 = vmatpush1.bf16.xpose.msra.mxu0 0
    %1140 = vmatprep.subr.bf16.mxu0 0
    %1141 = vmatpush1.bf16.xpose.msra.mxu0 0
    %1142 = vmatprep.mubr.bf16.mxu0 0
    %1143 = vmatmul.mubr.bf16.gmra.mrb[0].mxu0 %v1105
    %v1144 = vpop.f32.mrb[0].mxu0
    %v1145 = vadd.f32 %v112, %v1144
    %v1146 = vpop.f32.mrb[0].mxu0
    %v1147 = vpop.f32.mrb[0].mxu0
    %v1148 = vadd.f32 %v113, %v1147
    %v1149 = vpop.f32.mrb[0].mxu0
    %1150 = vdwg.mxu0
    %v1151 = vsel %vm234, %v1145, -inf
    %1152 = vmax.xlane.f32.xlu0 %v1151
    %v1153 = vpop.xlane.xlu0 %1152
    %v1154 = vsel %vm234, %v1148, -inf
    %1155 = vmax.xlane.f32.xlu0 %v1154
    %v1156 = vpop.xlane.xlu0 %1155
    %v1157 = vsub.f32 %v1145, %v1153
    %v1158 = vsub.f32 %v1148, %v1156
    %v1159 = vmul.f32 %v1157, 1.442695
    %v1160 = vpow.pop %v1159
    %v1161 = vmul.f32 %v1158, 1.442695
    %v1162 = vpow.pop %v1161
    %v1163 = vsel %vm234, %v1160, 0.0
    %1164 = vadd.xlane.f32.xlu0 %v1163
    %v1165 = vpop.xlane.xlu0 %1164
    %v1166 = vsel %vm234, %v1162, 0.0
    %1167 = vadd.xlane.f32.xlu0 %v1166
    %v1168 = vpop.xlane.xlu0 %1167
    %v1169 = vrcp.pop %v1165
    %v1170 = vrcp.pop %v1168
    %v1171 = vmul.f32 %v1160, %v1169
    %v1172 = vmul.f32 %v1162, %v1170
    %v1173 = vpack.c.bf16 %v1172, %v1171
    %1174 = vrot.lane.b32.xlu0 %v1100, 64
    %v1175 = vpop.permute.xlu0 %1174
    %v1178 = vsel %vm234, %v1173, 0
    %1180 = vmatprep.subr.bf16.mxu0 0
    %1181 = vmatpush1.bf16.msra.mxu0 %v1175
    %1182 = vmatprep.subr.bf16.mxu0 0
    %1183 = vmatpush1.bf16.msra.mxu0 0
    %1184 = vmatprep.subr.bf16.mxu0 0
    %1185 = vmatpush1.bf16.msra.mxu0 0
    %1186 = vmatprep.subr.bf16.mxu0 0
    %1187 = vmatpush1.bf16.msra.mxu0 0
    %1188 = vmatprep.subr.bf16.mxu0 0
    %1189 = vmatpush1.bf16.msra.mxu0 0
    %1190 = vmatprep.subr.bf16.mxu0 0
    %1191 = vmatpush1.bf16.msra.mxu0 0
    %1192 = vmatprep.subr.bf16.mxu0 0
    %1193 = vmatpush1.bf16.msra.mxu0 0
    %1194 = vmatprep.subr.bf16.mxu0 0
    %1195 = vmatpush1.bf16.msra.mxu0 0
    %1196 = vmatprep.subr.bf16.mxu0 0
    %1197 = vmatpush1.bf16.msra.mxu0 0
    %1198 = vmatprep.subr.bf16.mxu0 0
    %1199 = vmatpush1.bf16.msra.mxu0 0
    %1200 = vmatprep.subr.bf16.mxu0 0
    %1201 = vmatpush1.bf16.msra.mxu0 0
    %1202 = vmatprep.subr.bf16.mxu0 0
    %1203 = vmatpush1.bf16.msra.mxu0 0
    %1204 = vmatprep.subr.bf16.mxu0 0
    %1205 = vmatpush1.bf16.msra.mxu0 0
    %1206 = vmatprep.subr.bf16.mxu0 0
    %1207 = vmatpush1.bf16.msra.mxu0 0
    %1208 = vmatprep.subr.bf16.mxu0 0
    %1209 = vmatpush1.bf16.msra.mxu0 0
    %1210 = vmatprep.subr.bf16.mxu0 0
    %1211 = vmatpush1.bf16.msra.mxu0 0
    %1212 = vmatprep.mubr.bf16.mxu0 0
    %1213 = vmatmul.mubr.bf16.gmra.mrb[0].mxu0 %v1178
    %v1214 = vpop.f32.mrb[0].mxu0
    %v1215 = vadd.f32 0.0, %v1214
    %v1216 = vpop.f32.mrb[0].mxu0
    %v1217 = vpop.f32.mrb[0].mxu0
    %v1218 = vadd.f32 0.0, %v1217
    %v1219 = vpop.f32.mrb[0].mxu0
    %1220 = vdwg.mxu0
    %1221 = vrot.lane.b32.xlu0 %v1100, 120
    %v1222 = vpop.permute.xlu0 %1221
    %1223 = vrot.lane.b32.xlu0 %v1100, 88
    %v1224 = vpop.permute.xlu0 %1223
    %v1226 = vsel %vm186, %v1222, 0
    %v1229 = vsel %vm186, %v1224, 0
    %1231 = vmatprep.subr.bf16.mxu0 0
    %1232 = vmatpush1.bf16.xpose.msra.mxu0 %v1229
    %1233 = vmatprep.subr.bf16.mxu0 0
    %1234 = vmatpush1.bf16.xpose.msra.mxu0 0
    %1235 = vmatprep.subr.bf16.mxu0 0
    %1236 = vmatpush1.bf16.xpose.msra.mxu0 0
    %1237 = vmatprep.subr.bf16.mxu0 0
    %1238 = vmatpush1.bf16.xpose.msra.mxu0 0
    %1239 = vmatprep.subr.bf16.mxu0 0
    %1240 = vmatpush1.bf16.xpose.msra.mxu0 0
    %1241 = vmatprep.subr.bf16.mxu0 0
    %1242 = vmatpush1.bf16.xpose.msra.mxu0 0
    %1243 = vmatprep.subr.bf16.mxu0 0
    %1244 = vmatpush1.bf16.xpose.msra.mxu0 0
    %1245 = vmatprep.subr.bf16.mxu0 0
    %1246 = vmatpush1.bf16.xpose.msra.mxu0 0
    %1247 = vmatprep.subr.bf16.mxu0 0
    %1248 = vmatpush1.bf16.xpose.msra.mxu0 0
    %1249 = vmatprep.subr.bf16.mxu0 0
    %1250 = vmatpush1.bf16.xpose.msra.mxu0 0
    %1251 = vmatprep.subr.bf16.mxu0 0
    %1252 = vmatpush1.bf16.xpose.msra.mxu0 0
    %1253 = vmatprep.subr.bf16.mxu0 0
    %1254 = vmatpush1.bf16.xpose.msra.mxu0 0
    %1255 = vmatprep.subr.bf16.mxu0 0
    %1256 = vmatpush1.bf16.xpose.msra.mxu0 0
    %1257 = vmatprep.subr.bf16.mxu0 0
    %1258 = vmatpush1.bf16.xpose.msra.mxu0 0
    %1259 = vmatprep.subr.bf16.mxu0 0
    %1260 = vmatpush1.bf16.xpose.msra.mxu0 0
    %1261 = vmatprep.subr.bf16.mxu0 0
    %1262 = vmatpush1.bf16.xpose.msra.mxu0 0
    %1263 = vmatprep.mubr.bf16.mxu0 0
    %1264 = vmatmul.mubr.bf16.gmra.mrb[0].mxu0 %v1226
    %v1265 = vpop.f32.mrb[0].mxu0
    %v1266 = vadd.f32 %v112, %v1265
    %v1267 = vpop.f32.mrb[0].mxu0
    %v1268 = vpop.f32.mrb[0].mxu0
    %v1269 = vadd.f32 %v113, %v1268
    %v1270 = vpop.f32.mrb[0].mxu0
    %1271 = vdwg.mxu0
    %v1272 = vsel %vm234, %v1266, -inf
    %1273 = vmax.xlane.f32.xlu0 %v1272
    %v1274 = vpop.xlane.xlu0 %1273
    %v1275 = vsel %vm234, %v1269, -inf
    %1276 = vmax.xlane.f32.xlu0 %v1275
    %v1277 = vpop.xlane.xlu0 %1276
    %v1278 = vsub.f32 %v1266, %v1274
    %v1279 = vsub.f32 %v1269, %v1277
    %v1280 = vmul.f32 %v1278, 1.442695
    %v1281 = vpow.pop %v1280
    %v1282 = vmul.f32 %v1279, 1.442695
    %v1283 = vpow.pop %v1282
    %v1284 = vsel %vm234, %v1281, 0.0
    %1285 = vadd.xlane.f32.xlu0 %v1284
    %v1286 = vpop.xlane.xlu0 %1285
    %v1287 = vsel %vm234, %v1283, 0.0
    %1288 = vadd.xlane.f32.xlu0 %v1287
    %v1289 = vpop.xlane.xlu0 %1288
    %v1290 = vrcp.pop %v1286
    %v1291 = vrcp.pop %v1289
    %v1292 = vmul.f32 %v1281, %v1290
    %v1293 = vmul.f32 %v1283, %v1291
    %v1294 = vpack.c.bf16 %v1293, %v1292
    %1295 = vrot.lane.b32.xlu0 %v1100, 56
    %v1296 = vpop.permute.xlu0 %1295
    %v1299 = vsel %vm234, %v1294, 0
    %1301 = vmatprep.subr.bf16.mxu0 0
    %1302 = vmatpush1.bf16.msra.mxu0 %v1296
    %1303 = vmatprep.subr.bf16.mxu0 0
    %1304 = vmatpush1.bf16.msra.mxu0 0
    %1305 = vmatprep.subr.bf16.mxu0 0
    %1306 = vmatpush1.bf16.msra.mxu0 0
    %1307 = vmatprep.subr.bf16.mxu0 0
    %1308 = vmatpush1.bf16.msra.mxu0 0
    %1309 = vmatprep.subr.bf16.mxu0 0
    %1310 = vmatpush1.bf16.msra.mxu0 0
    %1311 = vmatprep.subr.bf16.mxu0 0
    %1312 = vmatpush1.bf16.msra.mxu0 0
    %1313 = vmatprep.subr.bf16.mxu0 0
    %1314 = vmatpush1.bf16.msra.mxu0 0
    %1315 = vmatprep.subr.bf16.mxu0 0
    %1316 = vmatpush1.bf16.msra.mxu0 0
    %1317 = vmatprep.subr.bf16.mxu0 0
    %1318 = vmatpush1.bf16.msra.mxu0 0
    %1319 = vmatprep.subr.bf16.mxu0 0
    %1320 = vmatpush1.bf16.msra.mxu0 0
    %1321 = vmatprep.subr.bf16.mxu0 0
    %1322 = vmatpush1.bf16.msra.mxu0 0
    %1323 = vmatprep.subr.bf16.mxu0 0
    %1324 = vmatpush1.bf16.msra.mxu0 0
    %1325 = vmatprep.subr.bf16.mxu0 0
    %1326 = vmatpush1.bf16.msra.mxu0 0
    %1327 = vmatprep.subr.bf16.mxu0 0
    %1328 = vmatpush1.bf16.msra.mxu0 0
    %1329 = vmatprep.subr.bf16.mxu0 0
    %1330 = vmatpush1.bf16.msra.mxu0 0
    %1331 = vmatprep.subr.bf16.mxu0 0
    %1332 = vmatpush1.bf16.msra.mxu0 0
    %1333 = vmatprep.mubr.bf16.mxu0 0
    %1334 = vmatmul.mubr.bf16.gmra.mrb[0].mxu0 %v1299
    %v1335 = vpop.f32.mrb[0].mxu0
    %v1336 = vadd.f32 0.0, %v1335
    %v1337 = vpop.f32.mrb[0].mxu0
    %v1338 = vpop.f32.mrb[0].mxu0
    %v1339 = vadd.f32 0.0, %v1338
    %v1340 = vpop.f32.mrb[0].mxu0
    %1341 = vdwg.mxu0
    %1342 = vrot.lane.b32.xlu0 %v1100, 112
    %v1343 = vpop.permute.xlu0 %1342
    %1344 = vrot.lane.b32.xlu0 %v1100, 80
    %v1345 = vpop.permute.xlu0 %1344
    %v1347 = vsel %vm186, %v1343, 0
    %v1350 = vsel %vm186, %v1345, 0
    %1352 = vmatprep.subr.bf16.mxu0 0
    %1353 = vmatpush1.bf16.xpose.msra.mxu0 %v1350
    %1354 = vmatprep.subr.bf16.mxu0 0
    %1355 = vmatpush1.bf16.xpose.msra.mxu0 0
    %1356 = vmatprep.subr.bf16.mxu0 0
    %1357 = vmatpush1.bf16.xpose.msra.mxu0 0
    %1358 = vmatprep.subr.bf16.mxu0 0
    %1359 = vmatpush1.bf16.xpose.msra.mxu0 0
    %1360 = vmatprep.subr.bf16.mxu0 0
    %1361 = vmatpush1.bf16.xpose.msra.mxu0 0
    %1362 = vmatprep.subr.bf16.mxu0 0
    %1363 = vmatpush1.bf16.xpose.msra.mxu0 0
    %1364 = vmatprep.subr.bf16.mxu0 0
    %1365 = vmatpush1.bf16.xpose.msra.mxu0 0
    %1366 = vmatprep.subr.bf16.mxu0 0
    %1367 = vmatpush1.bf16.xpose.msra.mxu0 0
    %1368 = vmatprep.subr.bf16.mxu0 0
    %1369 = vmatpush1.bf16.xpose.msra.mxu0 0
    %1370 = vmatprep.subr.bf16.mxu0 0
    %1371 = vmatpush1.bf16.xpose.msra.mxu0 0
    %1372 = vmatprep.subr.bf16.mxu0 0
    %1373 = vmatpush1.bf16.xpose.msra.mxu0 0
    %1374 = vmatprep.subr.bf16.mxu0 0
    %1375 = vmatpush1.bf16.xpose.msra.mxu0 0
    %1376 = vmatprep.subr.bf16.mxu0 0
    %1377 = vmatpush1.bf16.xpose.msra.mxu0 0
    %1378 = vmatprep.subr.bf16.mxu0 0
    %1379 = vmatpush1.bf16.xpose.msra.mxu0 0
    %1380 = vmatprep.subr.bf16.mxu0 0
    %1381 = vmatpush1.bf16.xpose.msra.mxu0 0
    %1382 = vmatprep.subr.bf16.mxu0 0
    %1383 = vmatpush1.bf16.xpose.msra.mxu0 0
    %1384 = vmatprep.mubr.bf16.mxu0 0
    %1385 = vmatmul.mubr.bf16.gmra.mrb[0].mxu0 %v1347
    %v1386 = vpop.f32.mrb[0].mxu0
    %v1387 = vadd.f32 %v112, %v1386
    %v1388 = vpop.f32.mrb[0].mxu0
    %v1389 = vpop.f32.mrb[0].mxu0
    %v1390 = vadd.f32 %v113, %v1389
    %v1391 = vpop.f32.mrb[0].mxu0
    %1392 = vdwg.mxu0
    %v1393 = vsel %vm234, %v1387, -inf
    %1394 = vmax.xlane.f32.xlu0 %v1393
    %v1395 = vpop.xlane.xlu0 %1394
    %v1396 = vsel %vm234, %v1390, -inf
    %1397 = vmax.xlane.f32.xlu0 %v1396
    %v1398 = vpop.xlane.xlu0 %1397
    %v1399 = vsub.f32 %v1387, %v1395
    %v1400 = vsub.f32 %v1390, %v1398
    %v1401 = vmul.f32 %v1399, 1.442695
    %v1402 = vpow.pop %v1401
    %v1403 = vmul.f32 %v1400, 1.442695
    %v1404 = vpow.pop %v1403
    %v1405 = vsel %vm234, %v1402, 0.0
    %1406 = vadd.xlane.f32.xlu0 %v1405
    %v1407 = vpop.xlane.xlu0 %1406
    %v1408 = vsel %vm234, %v1404, 0.0
    %1409 = vadd.xlane.f32.xlu0 %v1408
    %v1410 = vpop.xlane.xlu0 %1409
    %v1411 = vrcp.pop %v1407
    %v1412 = vrcp.pop %v1410
    %v1413 = vmul.f32 %v1402, %v1411
    %v1414 = vmul.f32 %v1404, %v1412
    %v1415 = vpack.c.bf16 %v1414, %v1413
    %1416 = vrot.lane.b32.xlu0 %v1100, 48
    %v1417 = vpop.permute.xlu0 %1416
    %v1420 = vsel %vm234, %v1415, 0
    %1422 = vmatprep.subr.bf16.mxu0 0
    %1423 = vmatpush1.bf16.msra.mxu0 %v1417
    %1424 = vmatprep.subr.bf16.mxu0 0
    %1425 = vmatpush1.bf16.msra.mxu0 0
    %1426 = vmatprep.subr.bf16.mxu0 0
    %1427 = vmatpush1.bf16.msra.mxu0 0
    %1428 = vmatprep.subr.bf16.mxu0 0
    %1429 = vmatpush1.bf16.msra.mxu0 0
    %1430 = vmatprep.subr.bf16.mxu0 0
    %1431 = vmatpush1.bf16.msra.mxu0 0
    %1432 = vmatprep.subr.bf16.mxu0 0
    %1433 = vmatpush1.bf16.msra.mxu0 0
    %1434 = vmatprep.subr.bf16.mxu0 0
    %1435 = vmatpush1.bf16.msra.mxu0 0
    %1436 = vmatprep.subr.bf16.mxu0 0
    %1437 = vmatpush1.bf16.msra.mxu0 0
    %1438 = vmatprep.subr.bf16.mxu0 0
    %1439 = vmatpush1.bf16.msra.mxu0 0
    %1440 = vmatprep.subr.bf16.mxu0 0
    %1441 = vmatpush1.bf16.msra.mxu0 0
    %1442 = vmatprep.subr.bf16.mxu0 0
    %1443 = vmatpush1.bf16.msra.mxu0 0
    %1444 = vmatprep.subr.bf16.mxu0 0
    %1445 = vmatpush1.bf16.msra.mxu0 0
    %1446 = vmatprep.subr.bf16.mxu0 0
    %1447 = vmatpush1.bf16.msra.mxu0 0
    %1448 = vmatprep.subr.bf16.mxu0 0
    %1449 = vmatpush1.bf16.msra.mxu0 0
    %1450 = vmatprep.subr.bf16.mxu0 0
    %1451 = vmatpush1.bf16.msra.mxu0 0
    %1452 = vmatprep.subr.bf16.mxu0 0
    %1453 = vmatpush1.bf16.msra.mxu0 0
    %1454 = vmatprep.mubr.bf16.mxu0 0
    %1455 = vmatmul.mubr.bf16.gmra.mrb[0].mxu0 %v1420
    %v1456 = vpop.f32.mrb[0].mxu0
    %v1457 = vadd.f32 0.0, %v1456
    %v1458 = vpop.f32.mrb[0].mxu0
    %v1459 = vpop.f32.mrb[0].mxu0
    %v1460 = vadd.f32 0.0, %v1459
    %v1461 = vpop.f32.mrb[0].mxu0
    %1462 = vdwg.mxu0
    %1463 = vrot.lane.b32.xlu0 %v1100, 104
    %v1464 = vpop.permute.xlu0 %1463
    %1465 = vrot.lane.b32.xlu0 %v1100, 72
    %v1466 = vpop.permute.xlu0 %1465
    %v1468 = vsel %vm186, %v1464, 0
    %v1471 = vsel %vm186, %v1466, 0
    %1473 = vmatprep.subr.bf16.mxu0 0
    %1474 = vmatpush1.bf16.xpose.msra.mxu0 %v1471
    %1475 = vmatprep.subr.bf16.mxu0 0
    %1476 = vmatpush1.bf16.xpose.msra.mxu0 0
    %1477 = vmatprep.subr.bf16.mxu0 0
    %1478 = vmatpush1.bf16.xpose.msra.mxu0 0
    %1479 = vmatprep.subr.bf16.mxu0 0
    %1480 = vmatpush1.bf16.xpose.msra.mxu0 0
    %1481 = vmatprep.subr.bf16.mxu0 0
    %1482 = vmatpush1.bf16.xpose.msra.mxu0 0
    %1483 = vmatprep.subr.bf16.mxu0 0
    %1484 = vmatpush1.bf16.xpose.msra.mxu0 0
    %1485 = vmatprep.subr.bf16.mxu0 0
    %1486 = vmatpush1.bf16.xpose.msra.mxu0 0
    %1487 = vmatprep.subr.bf16.mxu0 0
    %1488 = vmatpush1.bf16.xpose.msra.mxu0 0
    %1489 = vmatprep.subr.bf16.mxu0 0
    %1490 = vmatpush1.bf16.xpose.msra.mxu0 0
    %1491 = vmatprep.subr.bf16.mxu0 0
    %1492 = vmatpush1.bf16.xpose.msra.mxu0 0
    %1493 = vmatprep.subr.bf16.mxu0 0
    %1494 = vmatpush1.bf16.xpose.msra.mxu0 0
    %1495 = vmatprep.subr.bf16.mxu0 0
    %1496 = vmatpush1.bf16.xpose.msra.mxu0 0
    %1497 = vmatprep.subr.bf16.mxu0 0
    %1498 = vmatpush1.bf16.xpose.msra.mxu0 0
    %1499 = vmatprep.subr.bf16.mxu0 0
    %1500 = vmatpush1.bf16.xpose.msra.mxu0 0
    %1501 = vmatprep.subr.bf16.mxu0 0
    %1502 = vmatpush1.bf16.xpose.msra.mxu0 0
    %1503 = vmatprep.subr.bf16.mxu0 0
    %1504 = vmatpush1.bf16.xpose.msra.mxu0 0
    %1505 = vmatprep.mubr.bf16.mxu0 0
    %1506 = vmatmul.mubr.bf16.gmra.mrb[0].mxu0 %v1468
    %v1507 = vpop.f32.mrb[0].mxu0
    %v1508 = vadd.f32 %v112, %v1507
    %v1509 = vpop.f32.mrb[0].mxu0
    %v1510 = vpop.f32.mrb[0].mxu0
    %v1511 = vadd.f32 %v113, %v1510
    %v1512 = vpop.f32.mrb[0].mxu0
    %1513 = vdwg.mxu0
    %v1514 = vsel %vm234, %v1508, -inf
    %1515 = vmax.xlane.f32.xlu0 %v1514
    %v1516 = vpop.xlane.xlu0 %1515
    %v1517 = vsel %vm234, %v1511, -inf
    %1518 = vmax.xlane.f32.xlu0 %v1517
    %v1519 = vpop.xlane.xlu0 %1518
    %v1520 = vsub.f32 %v1508, %v1516
    %v1521 = vsub.f32 %v1511, %v1519
    %v1522 = vmul.f32 %v1520, 1.442695
    %v1523 = vpow.pop %v1522
    %v1524 = vmul.f32 %v1521, 1.442695
    %v1525 = vpow.pop %v1524
    %v1526 = vsel %vm234, %v1523, 0.0
    %1527 = vadd.xlane.f32.xlu0 %v1526
    %v1528 = vpop.xlane.xlu0 %1527
    %v1529 = vsel %vm234, %v1525, 0.0
    %1530 = vadd.xlane.f32.xlu0 %v1529
    %v1531 = vpop.xlane.xlu0 %1530
    %v1532 = vrcp.pop %v1528
    %v1533 = vrcp.pop %v1531
    %v1534 = vmul.f32 %v1523, %v1532
    %v1535 = vmul.f32 %v1525, %v1533
    %v1536 = vpack.c.bf16 %v1535, %v1534
    %1537 = vrot.lane.b32.xlu0 %v1100, 40
    %v1538 = vpop.permute.xlu0 %1537
    %v1541 = vsel %vm234, %v1536, 0
    %1543 = vmatprep.subr.bf16.mxu0 0
    %1544 = vmatpush1.bf16.msra.mxu0 %v1538
    %1545 = vmatprep.subr.bf16.mxu0 0
    %1546 = vmatpush1.bf16.msra.mxu0 0
    %1547 = vmatprep.subr.bf16.mxu0 0
    %1548 = vmatpush1.bf16.msra.mxu0 0
    %1549 = vmatprep.subr.bf16.mxu0 0
    %1550 = vmatpush1.bf16.msra.mxu0 0
    %1551 = vmatprep.subr.bf16.mxu0 0
    %1552 = vmatpush1.bf16.msra.mxu0 0
    %1553 = vmatprep.subr.bf16.mxu0 0
    %1554 = vmatpush1.bf16.msra.mxu0 0
    %1555 = vmatprep.subr.bf16.mxu0 0
    %1556 = vmatpush1.bf16.msra.mxu0 0
    %1557 = vmatprep.subr.bf16.mxu0 0
    %1558 = vmatpush1.bf16.msra.mxu0 0
    %1559 = vmatprep.subr.bf16.mxu0 0
    %1560 = vmatpush1.bf16.msra.mxu0 0
    %1561 = vmatprep.subr.bf16.mxu0 0
    %1562 = vmatpush1.bf16.msra.mxu0 0
    %1563 = vmatprep.subr.bf16.mxu0 0
    %1564 = vmatpush1.bf16.msra.mxu0 0
    %1565 = vmatprep.subr.bf16.mxu0 0
    %1566 = vmatpush1.bf16.msra.mxu0 0
    %1567 = vmatprep.subr.bf16.mxu0 0
    %1568 = vmatpush1.bf16.msra.mxu0 0
    %1569 = vmatprep.subr.bf16.mxu0 0
    %1570 = vmatpush1.bf16.msra.mxu0 0
    %1571 = vmatprep.subr.bf16.mxu0 0
    %1572 = vmatpush1.bf16.msra.mxu0 0
    %1573 = vmatprep.subr.bf16.mxu0 0
    %1574 = vmatpush1.bf16.msra.mxu0 0
    %1575 = vmatprep.mubr.bf16.mxu0 0
    %1576 = vmatmul.mubr.bf16.gmra.mrb[0].mxu0 %v1541
    %v1577 = vpop.f32.mrb[0].mxu0
    %v1578 = vadd.f32 0.0, %v1577
    %v1579 = vpop.f32.mrb[0].mxu0
    %v1580 = vpop.f32.mrb[0].mxu0
    %v1581 = vadd.f32 0.0, %v1580
    %v1582 = vpop.f32.mrb[0].mxu0
    %1583 = vdwg.mxu0
    %1586 = vrot.lane.b32.xlu0 %v1336, 8
    %v1587 = vpop.permute.xlu0 %1586
    %1588 = vrot.lane.b32.xlu0 %v1339, 8
    %v1589 = vpop.permute.xlu0 %1588
    %1594 = vrot.lane.b32.xlu0 %v1457, 16
    %v1595 = vpop.permute.xlu0 %1594
    %1596 = vrot.lane.b32.xlu0 %v1460, 16
    %v1597 = vpop.permute.xlu0 %1596
    %1602 = vrot.lane.b32.xlu0 %v1578, 24
    %v1603 = vpop.permute.xlu0 %1602
    %1604 = vrot.lane.b32.xlu0 %v1581, 24
    %v1605 = vpop.permute.xlu0 %1604
    %v1608 = vsel %vm186, %v1215, %v1587
    %v1609 = vsel %vm186, %v1218, %v1589
    %v1610 = vsel %vm234, %v1608, %v1595
    %v1611 = vsel %vm234, %v1609, %v1597
    %v1612 = vsel %vm696, %v1610, %v1603
    %v1613 = vsel %vm696, %v1611, %v1605
    %v1614 = vpack.c.bf16 %v1613, %v1612
    %s1615 = scalar_lea.vmem %s6, 16
    %v1616 = vld [vmem:[%s1615] sm:$0xf]
    %v1617 = vld [vmem:[%s1615 + $0x4] sm:$0xf]
    %v1618 = vld [vmem:[%s1615 + $0x8] sm:$0xf]
    %v1619 = vld [vmem:[%s1615 + $0xc] sm:$0xf]
    %s1620 = scalar_lea.vmem %s7, 1
    %v1621 = vld [vmem:[%s1620] sm:$0x1]
    %v1623 = vlaneseq
    %v1624 = vshrl.u32 %v1623, 7
    %v1625 = vsub.s32 0, %v1624
    %v1626 = vrot.slane %v1621, %v1625
    %v1632 = vunpack.c.l.b16 %v1616
    %v1633 = vunpack.c.l.b16 %v1617
    %v1634 = vunpack.c.l.b16 %v1618
    %v1635 = vunpack.c.l.b16 %v1619
    %v1636 = vpack.c.b16 %v1633, %v1632
    %v1637 = vpack.c.b16 %v1635, %v1634
    %v1641 = vsel %vm68, %v1614, 0
    %1643 = vmatprep.subr.bf16.mxu0 0
    %1644 = vmatpush1.bf16.msra.mxu0 %v1636
    %1645 = vmatprep.subr.bf16.mxu0 0
    %1646 = vmatpush1.bf16.msra.mxu0 %v1637
    %1647 = vmatprep.subr.bf16.mxu0 0
    %1648 = vmatpush1.bf16.msra.mxu0 0
    %1649 = vmatprep.subr.bf16.mxu0 0
    %1650 = vmatpush1.bf16.msra.mxu0 0
    %1651 = vmatprep.subr.bf16.mxu0 0
    %1652 = vmatpush1.bf16.msra.mxu0 0
    %1653 = vmatprep.subr.bf16.mxu0 0
    %1654 = vmatpush1.bf16.msra.mxu0 0
    %1655 = vmatprep.subr.bf16.mxu0 0
    %1656 = vmatpush1.bf16.msra.mxu0 0
    %1657 = vmatprep.subr.bf16.mxu0 0
    %1658 = vmatpush1.bf16.msra.mxu0 0
    %1659 = vmatprep.subr.bf16.mxu0 0
    %1660 = vmatpush1.bf16.msra.mxu0 0
    %1661 = vmatprep.subr.bf16.mxu0 0
    %1662 = vmatpush1.bf16.msra.mxu0 0
    %1663 = vmatprep.subr.bf16.mxu0 0
    %1664 = vmatpush1.bf16.msra.mxu0 0
    %1665 = vmatprep.subr.bf16.mxu0 0
    %1666 = vmatpush1.bf16.msra.mxu0 0
    %1667 = vmatprep.subr.bf16.mxu0 0
    %1668 = vmatpush1.bf16.msra.mxu0 0
    %1669 = vmatprep.subr.bf16.mxu0 0
    %1670 = vmatpush1.bf16.msra.mxu0 0
    %1671 = vmatprep.subr.bf16.mxu0 0
    %1672 = vmatpush1.bf16.msra.mxu0 0
    %1673 = vmatprep.subr.bf16.mxu0 0
    %1674 = vmatpush1.bf16.msra.mxu0 0
    %1675 = vmatprep.mubr.bf16.mxu0 0
    %1676 = vmatmul.mubr.bf16.gmra.mrb[0].mxu0 %v1641
    %v1677 = vpop.f32.mrb[0].mxu0
    %v1678 = vadd.f32 %v1626, %v1677
    %v1679 = vpop.f32.mrb[0].mxu0
    %v1680 = vpop.f32.mrb[0].mxu0
    %v1681 = vadd.f32 %v1626, %v1680
    %v1682 = vpop.f32.mrb[0].mxu0
    %1683 = vdwg.mxu0
    %v1684 = vadd.f32 %v1028, %v1678
    %v1685 = vadd.f32 %v1029, %v1681
    %s1686 = scalar_lea.vmem %s8, 1
    %v1687 = vld [vmem:[%s1686] sm:$0x1]
    %s1688 = scalar_lea.vmem %s9, 1
    %v1689 = vld [vmem:[%s1688] sm:$0x1]
    %v1690 = vsel %vm68, %v1684, 0.0
    %1691 = vadd.xlane.f32.xlu0 %v1690
    %v1692 = vpop.xlane.xlu0 %1691
    %v1693 = vsel %vm68, %v1685, 0.0
    %1694 = vadd.xlane.f32.xlu0 %v1693
    %v1695 = vpop.xlane.xlu0 %1694
    %v1696 = vmul.f32 %v1692, %v75
    %v1697 = vmul.f32 %v1695, %v75
    %v1698 = vsub.f32 %v1684, %v1696
    %v1699 = vsub.f32 %v1685, %v1697
    %v1700 = vmul.f32 %v1698, %v1698
    %v1701 = vmul.f32 %v1699, %v1699
    %v1702 = vsel %vm68, %v1700, 0.0
    %1703 = vadd.xlane.f32.xlu0 %v1702
    %v1704 = vpop.xlane.xlu0 %1703
    %v1705 = vsel %vm68, %v1701, 0.0
    %1706 = vadd.xlane.f32.xlu0 %v1705
    %v1707 = vpop.xlane.xlu0 %1706
    %v1708 = vmul.f32 %v1704, %v75
    %v1709 = vmul.f32 %v1707, %v75
    %v1710 = vadd.f32 %v1708, 1e-12
    %v1711 = vadd.f32 %v1709, 1e-12
    %v1712 = vrsqrt.pop %v1710
    %v1713 = vrsqrt.pop %v1711
    %v1714 = vmul.f32 %v1698, %v1712
    %v1715 = vmul.f32 %v1699, %v1713
    %v1717 = vlaneseq
    %v1718 = vshrl.u32 %v1717, 7
    %v1719 = vsub.s32 0, %v1718
    %v1720 = vrot.slane %v1687, %v1719
    %v1722 = vmul.f32 %v1714, %v1720
    %v1723 = vmul.f32 %v1715, %v1720
    %v1725 = vlaneseq
    %v1726 = vshrl.u32 %v1725, 7
    %v1727 = vsub.s32 0, %v1726
    %v1728 = vrot.slane %v1689, %v1727
    %v1730 = vadd.f32 %v1722, %v1728
    %v1731 = vadd.f32 %v1723, %v1728
    %v1732 = vpack.c.bf16 %v1731, %v1730
    %s1733 = scalar_lea.vmem %s10, 16
    %v1734 = vld [vmem:[%s1733] sm:$0xf]
    %v1735 = vld [vmem:[%s1733 + $0x4] sm:$0xf]
    %v1736 = vld [vmem:[%s1733 + $0x8] sm:$0xf]
    %v1737 = vld [vmem:[%s1733 + $0xc] sm:$0xf]
    %s1738 = scalar_lea.vmem %s11, 1
    %v1739 = vld [vmem:[%s1738] sm:$0x1]
    %v1741 = vlaneseq
    %v1742 = vshrl.u32 %v1741, 7
    %v1743 = vsub.s32 0, %v1742
    %v1744 = vrot.slane %v1739, %v1743
    %v1750 = vunpack.c.l.b16 %v1734
    %v1751 = vunpack.c.l.b16 %v1735
    %v1752 = vunpack.c.l.b16 %v1736
    %v1753 = vunpack.c.l.b16 %v1737
    %v1754 = vpack.c.b16 %v1751, %v1750
    %v1755 = vpack.c.b16 %v1753, %v1752
    %v1759 = vsel %vm68, %v1732, 0
    %1761 = vmatprep.subr.bf16.mxu0 0
    %1762 = vmatpush1.bf16.msra.mxu0 %v1754
    %1763 = vmatprep.subr.bf16.mxu0 0
    %1764 = vmatpush1.bf16.msra.mxu0 %v1755
    %1765 = vmatprep.subr.bf16.mxu0 0
    %1766 = vmatpush1.bf16.msra.mxu0 0
    %1767 = vmatprep.subr.bf16.mxu0 0
    %1768 = vmatpush1.bf16.msra.mxu0 0
    %1769 = vmatprep.subr.bf16.mxu0 0
    %1770 = vmatpush1.bf16.msra.mxu0 0
    %1771 = vmatprep.subr.bf16.mxu0 0
    %1772 = vmatpush1.bf16.msra.mxu0 0
    %1773 = vmatprep.subr.bf16.mxu0 0
    %1774 = vmatpush1.bf16.msra.mxu0 0
    %1775 = vmatprep.subr.bf16.mxu0 0
    %1776 = vmatpush1.bf16.msra.mxu0 0
    %1777 = vmatprep.subr.bf16.mxu0 0
    %1778 = vmatpush1.bf16.msra.mxu0 0
    %1779 = vmatprep.subr.bf16.mxu0 0
    %1780 = vmatpush1.bf16.msra.mxu0 0
    %1781 = vmatprep.subr.bf16.mxu0 0
    %1782 = vmatpush1.bf16.msra.mxu0 0
    %1783 = vmatprep.subr.bf16.mxu0 0
    %1784 = vmatpush1.bf16.msra.mxu0 0
    %1785 = vmatprep.subr.bf16.mxu0 0
    %1786 = vmatpush1.bf16.msra.mxu0 0
    %1787 = vmatprep.subr.bf16.mxu0 0
    %1788 = vmatpush1.bf16.msra.mxu0 0
    %1789 = vmatprep.subr.bf16.mxu0 0
    %1790 = vmatpush1.bf16.msra.mxu0 0
    %1791 = vmatprep.subr.bf16.mxu0 0
    %1792 = vmatpush1.bf16.msra.mxu0 0
    %1793 = vmatprep.mubr.bf16.mxu0 0
    %1794 = vmatmul.mubr.bf16.gmra.mrb[0].mxu0 %v1759
    %v1795 = vpop.f32.mrb[0].mxu0
    %v1796 = vadd.f32 %v1744, %v1795
    %v1797 = vpop.f32.mrb[0].mxu0
    %v1798 = vpop.f32.mrb[0].mxu0
    %v1799 = vadd.f32 %v1744, %v1798
    %v1800 = vpop.f32.mrb[0].mxu0
    %1801 = vdwg.mxu0
    %v1802 = vmul.f32 %v1796, %v1796
    %v1803 = vmul.f32 %v1799, %v1799
    %v1804 = vmul.f32 %v1796, %v1802
    %v1805 = vmul.f32 %v1799, %v1803
    %v1806 = vmul.f32 %v1804, 0.044715
    %v1807 = vmul.f32 %v1805, 0.044715
    %v1808 = vadd.f32 %v1796, %v1806
    %v1809 = vadd.f32 %v1799, %v1807
    %v1810 = vmul.f32 %v1808, 0.7978846
    %v1811 = vmul.f32 %v1809, 0.7978846
    %v1812 = vtanh.pop %v1810
    %v1813 = vtanh.pop %v1811
    %v1814 = vadd.f32 %v1812, 1.0
    %v1815 = vadd.f32 %v1813, 1.0
    %v1816 = vmul.f32 %v1814, 0.5
    %v1817 = vmul.f32 %v1815, 0.5
    %v1818 = vmul.f32 %v1796, %v1816
    %v1819 = vmul.f32 %v1799, %v1817
    %v1820 = vpack.c.bf16 %v1819, %v1818
    %s1821 = scalar_lea.vmem %s12, 32
    %v1822 = vld [vmem:[%s1821] sm:$0xf]
    %v1823 = vld [vmem:[%s1821 + $0x4] sm:$0xf]
    %v1824 = vld [vmem:[%s1821 + $0x8] sm:$0xf]
    %v1825 = vld [vmem:[%s1821 + $0xc] sm:$0xf]
    %v1826 = vld [vmem:[%s1821 + $0x10] sm:$0xf]
    %v1827 = vld [vmem:[%s1821 + $0x14] sm:$0xf]
    %v1828 = vld [vmem:[%s1821 + $0x18] sm:$0xf]
    %v1829 = vld [vmem:[%s1821 + $0x1c] sm:$0xf]
    %s1830 = scalar_lea.vmem %s13, 1
    %v1831 = vld [vmem:[%s1830] sm:$0x1]
    %v1833 = vlaneseq
    %v1834 = vshrl.u32 %v1833, 7
    %v1835 = vsub.s32 0, %v1834
    %v1836 = vrot.slane %v1831, %v1835
    %v1846 = vunpack.c.l.b16 %v1822
    %v1847 = vunpack.c.l.b16 %v1823
    %v1848 = vunpack.c.l.b16 %v1824
    %v1849 = vunpack.c.l.b16 %v1825
    %v1850 = vunpack.c.l.b16 %v1826
    %v1851 = vunpack.c.l.b16 %v1827
    %v1852 = vunpack.c.l.b16 %v1828
    %v1853 = vunpack.c.l.b16 %v1829
    %v1854 = vpack.c.b16 %v1847, %v1846
    %v1855 = vpack.c.b16 %v1849, %v1848
    %v1856 = vpack.c.b16 %v1851, %v1850
    %v1857 = vpack.c.b16 %v1853, %v1852
    %v1863 = vsel %vm939, %v1820, 0
    %1865 = vmatprep.subr.bf16.mxu0 0
    %1866 = vmatpush1.bf16.msra.mxu0 %v1854
    %1867 = vmatprep.subr.bf16.mxu0 0
    %1868 = vmatpush1.bf16.msra.mxu0 %v1855
    %1869 = vmatprep.subr.bf16.mxu0 0
    %1870 = vmatpush1.bf16.msra.mxu0 %v1856
    %1871 = vmatprep.subr.bf16.mxu0 0
    %1872 = vmatpush1.bf16.msra.mxu0 %v1857
    %1873 = vmatprep.subr.bf16.mxu0 0
    %1874 = vmatpush1.bf16.msra.mxu0 0
    %1875 = vmatprep.subr.bf16.mxu0 0
    %1876 = vmatpush1.bf16.msra.mxu0 0
    %1877 = vmatprep.subr.bf16.mxu0 0
    %1878 = vmatpush1.bf16.msra.mxu0 0
    %1879 = vmatprep.subr.bf16.mxu0 0
    %1880 = vmatpush1.bf16.msra.mxu0 0
    %1881 = vmatprep.subr.bf16.mxu0 0
    %1882 = vmatpush1.bf16.msra.mxu0 0
    %1883 = vmatprep.subr.bf16.mxu0 0
    %1884 = vmatpush1.bf16.msra.mxu0 0
    %1885 = vmatprep.subr.bf16.mxu0 0
    %1886 = vmatpush1.bf16.msra.mxu0 0
    %1887 = vmatprep.subr.bf16.mxu0 0
    %1888 = vmatpush1.bf16.msra.mxu0 0
    %1889 = vmatprep.subr.bf16.mxu0 0
    %1890 = vmatpush1.bf16.msra.mxu0 0
    %1891 = vmatprep.subr.bf16.mxu0 0
    %1892 = vmatpush1.bf16.msra.mxu0 0
    %1893 = vmatprep.subr.bf16.mxu0 0
    %1894 = vmatpush1.bf16.msra.mxu0 0
    %1895 = vmatprep.subr.bf16.mxu0 0
    %1896 = vmatpush1.bf16.msra.mxu0 0
    %1897 = vmatprep.mubr.bf16.mxu0 0
    %1898 = vmatmul.mubr.bf16.gmra.mrb[0].mxu0 %v1863
    %v1899 = vpop.f32.mrb[0].mxu0
    %v1900 = vadd.f32 %v1836, %v1899
    %v1901 = vpop.f32.mrb[0].mxu0
    %v1902 = vpop.f32.mrb[0].mxu0
    %v1903 = vadd.f32 %v1836, %v1902
    %v1904 = vpop.f32.mrb[0].mxu0
    %1905 = vdwg.mxu0
    %v1906 = vadd.f32 %v1730, %v1900
    %v1907 = vadd.f32 %v1731, %v1903
    %s1908 = scalar_lea.vmem %s14, 1
    %v1909 = vld [vmem:[%s1908] sm:$0x1]
    %s1910 = scalar_lea.vmem %s15, 1
    %v1911 = vld [vmem:[%s1910] sm:$0x1]
    %v1912 = vsel %vm68, %v1906, 0.0
    %1913 = vadd.xlane.f32.xlu0 %v1912
    %v1914 = vpop.xlane.xlu0 %1913
    %v1915 = vsel %vm68, %v1907, 0.0
    %1916 = vadd.xlane.f32.xlu0 %v1915
    %v1917 = vpop.xlane.xlu0 %1916
    %v1918 = vmul.f32 %v1914, %v75
    %v1919 = vmul.f32 %v1917, %v75
    %v1920 = vsub.f32 %v1906, %v1918
    %v1921 = vsub.f32 %v1907, %v1919
    %v1922 = vmul.f32 %v1920, %v1920
    %v1923 = vmul.f32 %v1921, %v1921
    %v1924 = vsel %vm68, %v1922, 0.0
    %1925 = vadd.xlane.f32.xlu0 %v1924
    %v1926 = vpop.xlane.xlu0 %1925
    %v1927 = vsel %vm68, %v1923, 0.0
    %1928 = vadd.xlane.f32.xlu0 %v1927
    %v1929 = vpop.xlane.xlu0 %1928
    %v1930 = vmul.f32 %v1926, %v75
    %v1931 = vmul.f32 %v1929, %v75
    %v1932 = vadd.f32 %v1930, 1e-12
    %v1933 = vadd.f32 %v1931, 1e-12
    %v1934 = vrsqrt.pop %v1932
    %v1935 = vrsqrt.pop %v1933
    %v1936 = vmul.f32 %v1920, %v1934
    %v1937 = vmul.f32 %v1921, %v1935
    %v1939 = vlaneseq
    %v1940 = vshrl.u32 %v1939, 7
    %v1941 = vsub.s32 0, %v1940
    %v1942 = vrot.slane %v1909, %v1941
    %v1944 = vmul.f32 %v1936, %v1942
    %v1945 = vmul.f32 %v1937, %v1942
    %v1947 = vlaneseq
    %v1948 = vshrl.u32 %v1947, 7
    %v1949 = vsub.s32 0, %v1948
    %v1950 = vrot.slane %v1911, %v1949
    %v1952 = vadd.f32 %v1944, %v1950
    %v1953 = vadd.f32 %v1945, %v1950
    %1954 = vst.msk [vmem:[#allocation2] sm:$0xff] %vm68, %v1952
    %1955 = vst.msk [vmem:[#allocation2 + $0x8] sm:$0xff] %vm68, %v1953
    %v1957 = vrot.slane %v1953, 7
    %vm1959 = vcmask 1040384
    %v1960 = vsel %vm1959, %v1952, %v1957
    %v1961 = vpack.c.bf16 %v1960, %v1960
    %v1962 = vld [vmem:[%s16] sm:$0xf]
    %v1963 = vld [vmem:[%s16 + $0x4] sm:$0xf]
    %v1964 = vld [vmem:[%s16 + $0x8] sm:$0xf]
    %v1965 = vld [vmem:[%s16 + $0xc] sm:$0xf]
    %v1966 = vld [vmem:[%s17] sm:$0x1]
    %v1968 = vlaneseq
    %v1969 = vshrl.u32 %v1968, 7
    %v1970 = vsub.s32 0, %v1969
    %v1971 = vrot.slane %v1966, %v1970
    %v1977 = vunpack.c.l.b16 %v1962
    %v1978 = vunpack.c.l.b16 %v1963
    %v1979 = vunpack.c.l.b16 %v1964
    %v1980 = vunpack.c.l.b16 %v1965
    %v1981 = vpack.c.b16 %v1978, %v1977
    %v1982 = vpack.c.b16 %v1980, %v1979
    %v1986 = vsel %vm68, %v1961, 0
    %1988 = vmatprep.subr.bf16.mxu0 0
    %1989 = vmatpush1.bf16.msra.mxu0 %v1981
    %1990 = vmatprep.subr.bf16.mxu0 0
    %1991 = vmatpush1.bf16.msra.mxu0 %v1982
    %1992 = vmatprep.subr.bf16.mxu0 0
    %1993 = vmatpush1.bf16.msra.mxu0 0
    %1994 = vmatprep.subr.bf16.mxu0 0
    %1995 = vmatpush1.bf16.msra.mxu0 0
    %1996 = vmatprep.subr.bf16.mxu0 0
    %1997 = vmatpush1.bf16.msra.mxu0 0
    %1998 = vmatprep.subr.bf16.mxu0 0
    %1999 = vmatpush1.bf16.msra.mxu0 0
    %2000 = vmatprep.subr.bf16.mxu0 0
    %2001 = vmatpush1.bf16.msra.mxu0 0
    %2002 = vmatprep.subr.bf16.mxu0 0
    %2003 = vmatpush1.bf16.msra.mxu0 0
    %2004 = vmatprep.subr.bf16.mxu0 0
    %2005 = vmatpush1.bf16.msra.mxu0 0
    %2006 = vmatprep.subr.bf16.mxu0 0
    %2007 = vmatpush1.bf16.msra.mxu0 0
    %2008 = vmatprep.subr.bf16.mxu0 0
    %2009 = vmatpush1.bf16.msra.mxu0 0
    %2010 = vmatprep.subr.bf16.mxu0 0
    %2011 = vmatpush1.bf16.msra.mxu0 0
    %2012 = vmatprep.subr.bf16.mxu0 0
    %2013 = vmatpush1.bf16.msra.mxu0 0
    %2014 = vmatprep.subr.bf16.mxu0 0
    %2015 = vmatpush1.bf16.msra.mxu0 0
    %2016 = vmatprep.subr.bf16.mxu0 0
    %2017 = vmatpush1.bf16.msra.mxu0 0
    %2018 = vmatprep.subr.bf16.mxu0 0
    %2019 = vmatpush1.bf16.msra.mxu0 0
    %2020 = vmatprep.mubr.bf16.mxu0 0
    %2021 = vmatmul.mubr.bf16.gmra.mrb[0].mxu0 %v1986
    %v2022 = vpop.f32.mrb[0].mxu0
    %v2023 = vadd.f32 %v1971, %v2022
    %v2024 = vpop.f32.mrb[0].mxu0
    %v2025 = vpop.f32.mrb[0].mxu0
    %v2026 = vpop.f32.mrb[0].mxu0
    %2027 = vdwg.mxu0
    %v2028 = vtanh.pop %v2023
    %vm2029 = vcmask 254976
    %2030 = vst.msk [vmem:[#allocation4] sm:$0x3] %vm2029, %v2028
    // Predicated region
    $region74: #{bert_forward.1} parent=1 // pred_check
      _
    $region75: #{bert_forward.1} parent=1 // pred_check_branch
      %2032 = sbr.rel (0) target = $region77
    $region76: #{bert_forward.1} parent=1 // pred_region
      %s2034 = ssub.s32 256, 256
      %2035 = vsyncadd [#allocation3], %s2034
      %s2036 = sshll.u32 [#allocation2], 4
      %s2037 = int_to_ptr.vmem [resolvable:$true] %s2036
      %2042 = dma.vmem_to_hbm [thread:$0]  %s2037, 256, %s18, [#allocation3], 128, 128, 8
    $region77: #{bert_forward.1} parent=1 // pred_fallthru
      _
    // Predicated region
    $region78: #{bert_forward.1} parent=1 // pred_check
      _
    $region79: #{bert_forward.1} parent=1 // pred_check_branch
      %2044 = sbr.rel (0) target = $region81
    $region80: #{bert_forward.1} parent=1 // pred_region
      %s2046 = ssub.s32 32, 32
      %2047 = vsyncadd [#allocation5], %s2046
      %s2049 = sshll.u32 [#allocation4], 4
      %s2050 = int_to_ptr.vmem [resolvable:$true] %s2049
      %2052 = dma.vmem_to_hbm [thread:$0]  %s2050, 32, %s19, [#allocation5]
    $region81: #{bert_forward.1} parent=1 // pred_fallthru
      _
    // Predicated region
    $region82: #{bert_forward.1} parent=1 // pred_check
      _
    $region83: #{bert_forward.1} parent=1 // pred_check_branch
      %2054 = sbr.rel (0) target = $region85
    $region84: #{bert_forward.1} parent=1 // pred_region
      %2055 = dma.done [#allocation3], 256
    $region85: #{bert_forward.1} parent=1 // pred_fallthru
      _
    // Predicated region
    $region86: #{bert_forward.1} parent=1 // pred_check
      _
    $region87: #{bert_forward.1} parent=1 // pred_check_branch
      %2057 = sbr.rel (0) target = $region89
    $region88: #{bert_forward.1} parent=1 // pred_region
      %2058 = dma.done [#allocation5], 32
    $region89: #{bert_forward.1} parent=1 // pred_fallthru
      _
    %2059 = vsyncpa [#allocation3], 1
    %2060 = vsyncpa [#allocation5], 1

</llo_original>
